<compile_context>
chip_gen: v7x
topology: tpu7x:2x2x1
jax: 0.10.0
libtpu: 0.0.40
codegen_flags: <defaults>
</compile_context>

<pallas_src>
import functools

import numpy as np
import jax
import jax.numpy as jnp
from jax.experimental import pallas as pl
from jax.experimental.pallas import tpu as pltpu


def _mm(a, b):
    return jnp.dot(a, b, preferred_element_type=jnp.float32)


def _round_up(n, m):
    return ((n + m - 1) // m) * m


# ----------------------------------------------------------------------------------
# Kernel
# ----------------------------------------------------------------------------------
def tscnnre_kernel(ts3_ref, x_ref, z_ref, w_ref, m2_ref, out_ref,
                   h1_scr, h2_scr, cnn_scr, *, TB, Lh, offs):
    n2 = TB * Lh

    def getw(name):
        r0, nr, nc = offs[name]
        return w_ref[r0:r0 + nr, 0:nc]

    # --- cnn[0:2]: Conv1d(C_in -> C1, k=3, pad=1) + ReLU ----------------------------
    # Single matmul with K = 3*C_in; the tap unfold (with zero padding at the sample
    # edges) was done on the host, so no rolls / boundary masks are needed here.
    h1 = jnp.maximum(_mm(ts3_ref[...], getw("w1")) + getw("b1"), 0.0)   # (TB*L, C1)
    h1_scr[...] = h1

    # --- cnn[2]: MaxPool1d(kernel=2, stride=2) --------------------------------------
    # Even/odd strided reads of the scratch; pairs never straddle a sample (L is even).
    pooled = jnp.maximum(h1_scr[pl.ds(0, n2, stride=2), :],
                         h1_scr[pl.ds(1, n2, stride=2), :])             # (TB*Lh, C1)

    # --- cnn[3:5]: Conv1d(C1 -> H_ts, k=3, pad=1) + ReLU ----------------------------
    m2f = m2_ref[:, 0:1]                    # kills the l-1 tap at pooled time 0
    m2l = m2_ref[:, 1:2]                    # kills the l+1 tap at pooled time Lh-1
    prev2 = pltpu.roll(pooled, 1, axis=0) * m2f
    next2 = pltpu.roll(pooled, n2 - 1, axis=0) * m2l
    h2 = (_mm(prev2, getw("w2p")) + _mm(pooled, getw("w2m"))
          + _mm(next2, getw("w2n")) + getw("b2"))
    h2 = jnp.maximum(h2, 0.0)                                           # (TB*Lh, H_ts)
    h2_scr[...] = h2

    # --- cnn[5]: AdaptiveMaxPool1d(1): per-sample sublane max reduction -------------
    for b in range(TB):
        cnn_scr[pl.ds(b, 1), :] = jnp.max(
            h2_scr[pl.ds(b * Lh, Lh), :], axis=0, keepdims=True)
    out_cnn = cnn_scr[...]                                              # (TB, H_ts)

    # --- fc_meta + ReLU --------------------------------------------------------------
    meta = jnp.maximum(_mm(x_ref[...], getw("wm")) + getw("bm"), 0.0)   # (TB, H_meta)

    # --- cat + fc_merge + ReLU (concat realized by splitting the merge weight) -------
    merged = jnp.maximum(
        _mm(out_cnn, getw("wmg_ts")) + _mm(meta, getw("wmg_meta")) + getw("bmg"), 0.0)

    # TODO(synk): Dropout(p=0.5) is identity in eval/inference mode; training-mode
    # masking (and 1/(1-p) scaling) is omitted.

    # --- fc_output (weight zero-padded to 128 lanes -> unmasked lane-dense store) ----
    out = _mm(merged, getw("wo")) + getw("bo")                          # (TB, 128)

    # TODO(synk): RandomEffectLayer is assumed to be a bias-free linear Z @ b_re -> (B,1)
    # that is broadcast-added across the output columns.
    re = jnp.sum(z_ref[...] * getw("bre"), axis=1, keepdims=True)       # (TB, 1)

    out_ref[...] = out + re


# ----------------------------------------------------------------------------------
# Host-side helpers
# ----------------------------------------------------------------------------------
def _pack_param_slab(segments):
    """Pack (name, 2D array) segments into one f32 slab; each segment 8-row aligned."""
    width = max(int(a.shape[1]) for _, a in segments)
    offs, row = {}, 0
    for name, a in segments:
        offs[name] = (row, int(a.shape[0]), int(a.shape[1]))
        row += _round_up(int(a.shape[0]), 8)
    slab = jnp.zeros((_round_up(row, 8), width), jnp.float32)
    for name, a in segments:
        r0, nr, nc = offs[name]
        slab = slab.at[r0:r0 + nr, 0:nc].set(jnp.asarray(a, jnp.float32))
    return slab, offs


@functools.lru_cache(maxsize=None)
def _conv2_masks(tb, lh):
    """Cached boundary masks for the second conv layer, keyed on (tile, pooled length)."""
    t = np.arange(tb * lh) % lh
    return np.stack([(t != 0), (t != lh - 1)], axis=1).astype(np.float32)  # (tb*lh, 2)


def _unfold3(ts):
    """(B, L, C) -> (B*L, 3C) rows [in[l-1], in[l], in[l+1]], zero padded at sample edges."""
    B, L, C = ts.shape
    z = jnp.zeros((B, 1, C), ts.dtype)
    prev = jnp.concatenate([z, ts[:, :-1, :]], axis=1)
    nxt = jnp.concatenate([ts[:, 1:, :], z], axis=1)
    return jnp.concatenate([prev, ts, nxt], axis=2).reshape(B * L, 3 * C)


def tscnnre_forward(ts, x, Z, params, *, batch_tile=8):
    f32 = jnp.float32
    B, L, C_in = ts.shape
    if L % 2 != 0:
        raise ValueError(f"L must be even for MaxPool1d(2,2); got L={L}")
    Lh = L // 2
    TB = min(batch_tile, B)
    if B % TB != 0:
        raise ValueError(f"batch {B} must be divisible by batch tile {TB}")
    if TB != B and TB % 8 != 0:
        raise ValueError("batch tile must be a multiple of 8 (sublane tiling) or == B")

    w1, w2 = params["w1"], params["w2"]              # (C1, C_in, 3), (H_ts, C1, 3)
    C1, H_ts = w1.shape[0], w2.shape[0]
    H_merge = params["wmg"].shape[0]
    O = params["wo"].shape[0]
    OPAD = _round_up(max(O, 128), 128)
    q = params["b_re"].shape[0]

    # ---- one packed parameter slab (single weight DMA) ----
    W1cat = jnp.concatenate([w1[:, :, k].T for k in range(3)], axis=0)   # (3*C_in, C1)
    wo_pad = jnp.zeros((H_merge, OPAD), f32).at[:, :O].set(params["wo"].T)
    bo_pad = jnp.zeros((1, OPAD), f32).at[0, :O].set(params["bo"])
    segments = [
        ("w1", W1cat),
        ("b1", params["b1"].reshape(1, -1)),
        ("w2p", w2[:, :, 0].T), ("w2m", w2[:, :, 1].T), ("w2n", w2[:, :, 2].T),
        ("b2", params["b2"].reshape(1, -1)),
        ("wm", params["wm"].T), ("bm", params["bm"].reshape(1, -1)),
        ("wmg_ts", params["wmg"][:, :H_ts].T),
        ("wmg_meta", params["wmg"][:, H_ts:].T),
        ("bmg", params["bmg"].reshape(1, -1)),
        ("wo", wo_pad), ("bo", bo_pad),
        ("bre", params["b_re"].reshape(1, -1)),
    ]
    wslab, offs = _pack_param_slab(segments)

    masks2 = jnp.asarray(_conv2_masks(TB, Lh))       # (TB*Lh, 2) cached host constant
    ts3 = _unfold3(ts.astype(f32))                   # (B*L, 3*C_in)

    grid = (B // TB,)
    kernel = functools.partial(tscnnre_kernel, TB=TB, Lh=Lh, offs=offs)
    out_padded = pl.pallas_call(
        kernel,
        out_shape=jax.ShapeDtypeStruct((B, OPAD), f32),
        grid=grid,
        in_specs=[
            pl.BlockSpec((TB * L, 3 * C_in), lambda i: (i, 0)),
            pl.BlockSpec((TB, x.shape[1]), lambda i: (i, 0)),
            pl.BlockSpec((TB, q), lambda i: (i, 0)),
            pl.BlockSpec(wslab.shape, lambda i: (0, 0)),     # fetched once, reused
            pl.BlockSpec(masks2.shape, lambda i: (0, 0)),    # fetched once, reused
        ],
        out_specs=pl.BlockSpec((TB, OPAD), lambda i: (i, 0)),
        scratch_shapes=[
            pltpu.VMEM((TB * L, C1), f32),     # conv1 activations (MaxPool source)
            pltpu.VMEM((TB * Lh, H_ts), f32),  # conv2 activations (AdaptiveMaxPool source)
            pltpu.VMEM((TB, H_ts), f32),       # per-sample pooled CNN features
        ],
        compiler_params=pltpu.CompilerParams(dimension_semantics=("parallel",)),
    )(ts3, x.astype(f32), Z.astype(f32), wslab, masks2)
    return out_padded[:, :O]


# ----------------------------------------------------------------------------------
# Pure-JAX reference (mirrors the PyTorch forward, eval mode)
# ----------------------------------------------------------------------------------
def tscnnre_reference(ts, x, Z, params):
    hp = jax.lax.Precision.HIGHEST
    f32 = jnp.float32
    dn = ("NCH", "OIH", "NCH")
    tsc = jnp.transpose(ts.astype(f32), (0, 2, 1))                      # (B, C_in, L)
    h = jax.lax.conv_general_dilated(tsc, params["w1"].astype(f32), (1,), [(1, 1)],
                                     dimension_numbers=dn, precision=hp)
    h = jnp.maximum(h + params["b1"][None, :, None], 0.0)
    B, C1, L = h.shape
    h = jnp.max(h.reshape(B, C1, L // 2, 2), axis=3)                    # MaxPool1d(2,2)
    h = jax.lax.conv_general_dilated(h, params["w2"].astype(f32), (1,), [(1, 1)],
                                     dimension_numbers=dn, precision=hp)
    h = jnp.maximum(h + params["b2"][None, :, None], 0.0)
    out_cnn = jnp.max(h, axis=2)                                        # AdaptiveMaxPool1d(1)
    meta = jnp.maximum(jnp.dot(x, params["wm"].T, precision=hp) + params["bm"], 0.0)
    comb = jnp.concatenate([out_cnn, meta], axis=1)
    merged = jnp.maximum(jnp.dot(comb, params["wmg"].T, precision=hp) + params["bmg"], 0.0)
    out = jnp.dot(merged, params["wo"].T, precision=hp) + params["bo"]
    re = jnp.dot(Z, params["b_re"].reshape(-1, 1), precision=hp)
    return out + re


def init_params(key, ts_input_size, meta_input_size, hidden_merge_size,
                hidden_ts_size, hidden_meta_size, output_size,
                nr_groups, num_random_effects, num_channels):
    ks = jax.random.split(key, 11)

    def u(k, shape, fan_in):
        bound = 1.0 / float(fan_in) ** 0.5
        return jax.random.uniform(k, shape, jnp.float32, -bound, bound)

    q = nr_groups * num_random_effects
    return dict(
        w1=u(ks[0], (num_channels, ts_input_size, 3), ts_input_size * 3),
        b1=u(ks[1], (num_channels,), ts_input_size * 3),
        w2=u(ks[2], (hidden_ts_size, num_channels, 3), num_channels * 3),
        b2=u(ks[3], (hidden_ts_size,), num_channels * 3),
        wm=u(ks[4], (hidden_meta_size, meta_input_size), meta_input_size),
        bm=u(ks[5], (hidden_meta_size,), meta_input_size),
        wmg=u(ks[6], (hidden_merge_size, hidden_ts_size + hidden_meta_size),
              hidden_ts_size + hidden_meta_size),
        bmg=u(ks[7], (hidden_merge_size,), hidden_ts_size + hidden_meta_size),
        wo=u(ks[8], (output_size, hidden_merge_size), hidden_merge_size),
        bo=u(ks[9], (output_size,), hidden_merge_size),
        b_re=u(ks[10], (q,), q),
    )


if __name__ == "__main__":
    B, L = 16, 16
    ts_input_size = 4
    num_channels = 8
    hidden_ts_size = 16
    meta_input_size = 6
    hidden_meta_size = 16
    hidden_merge_size = 32
    output_size = 4
    nr_groups, num_random_effects = 3, 2
    q = nr_groups * num_random_effects

    key = jax.random.PRNGKey(0)
    k_ts, k_x, k_z, k_p = jax.random.split(key, 4)
    ts = jax.random.normal(k_ts, (B, L, ts_input_size), jnp.float32)
    x = jax.random.normal(k_x, (B, meta_input_size), jnp.float32)
    Z = jax.random.normal(k_z, (B, q), jnp.float32)   # random-effects design matrix

    params = init_params(k_p, ts_input_size, meta_input_size, hidden_merge_size,
                         hidden_ts_size, hidden_meta_size, output_size,
                         nr_groups, num_random_effects, num_channels)

    out = tscnnre_forward(ts, x, Z, params, batch_tile=8)   # grid=(2,), parallel batch
    jax.block_until_ready(out)
    assert out.shape == (B, output_size) and out.dtype == jnp.float32

    ref = tscnnre_reference(ts, x, Z, params)
    err = float(jnp.max(jnp.abs(out - ref)))
    assert err < 2e-3, f"max abs error vs reference: {err}"
    print("KERNEL_OK")
</pallas_src>

<mosaic_0001>
module attributes {stable_mosaic.version = 11 : i64} {
  func.func @tscnnre_kernel(%arg0: i32, %arg1: memref<128x12xf32, #tpu.memory_space<vmem>>, %arg2: memref<8x6xf32, #tpu.memory_space<vmem>>, %arg3: memref<8x6xf32, #tpu.memory_space<vmem>>, %arg4: memref<160x128xf32, #tpu.memory_space<vmem>>, %arg5: memref<64x2xf32, #tpu.memory_space<vmem>>, %arg6: memref<8x128xf32, #tpu.memory_space<vmem>>, %arg7: memref<128x8xf32, #tpu.memory_space<vmem>>, %arg8: memref<64x16xf32, #tpu.memory_space<vmem>>, %arg9: memref<8x16xf32, #tpu.memory_space<vmem>>) attributes {dimension_semantics = [#tpu.dimension_semantics<parallel>], iteration_bounds = array<i64: 2>, scalar_prefetch = 0 : i64, scratch_operands = 3 : i64, tpu.core_type = #tpu.core_type<tc>, window_params = [{transform_indices = @transform_0, window_bounds = array<i64: 128, 12>}, {transform_indices = @transform_1, window_bounds = array<i64: 8, 6>}, {transform_indices = @transform_2, window_bounds = array<i64: 8, 6>}, {pipeline_mode = #tpu.pipeline_mode<synchronous>, transform_indices = @transform_3, window_bounds = array<i64: 160, 128>}, {pipeline_mode = #tpu.pipeline_mode<synchronous>, transform_indices = @transform_4, window_bounds = array<i64: 64, 2>}, {transform_indices = @transform_5, window_bounds = array<i64: 8, 128>}]} {
    %c0 = arith.constant 0 : index
    %c0_0 = arith.constant 0 : index
    %0 = vector.load %arg1[%c0, %c0_0] : memref<128x12xf32, #tpu.memory_space<vmem>>, vector<128x12xf32>
    %c0_1 = arith.constant 0 : index
    %c0_2 = arith.constant 0 : index
    %1 = vector.load %arg4[%c0_1, %c0_2] : memref<160x128xf32, #tpu.memory_space<vmem>>, vector<12x8xf32>
    %cst = arith.constant dense<0.000000e+00> : vector<128x8xf32>
    %2 = tpu.matmul %0, %1, %cst {dimension_numbers = #tpu.dot_dimension_numbers<[1], [0], [0], [1], [0, 0, 1, 1], [], []>} : vector<128x12xf32>, vector<12x8xf32>, vector<128x8xf32> -> vector<128x8xf32>
    %c16 = arith.constant 16 : index
    %c0_3 = arith.constant 0 : index
    %3 = vector.load %arg4[%c16, %c0_3] : memref<160x128xf32, #tpu.memory_space<vmem>>, vector<1x8xf32>
    %4 = vector.broadcast %3 : vector<1x8xf32> to vector<128x8xf32>
    %5 = arith.addf %2, %4 : vector<128x8xf32>
    %cst_4 = arith.constant 0.000000e+00 : f32
    %6 = vector.broadcast %cst_4 : f32 to vector<128x8xf32>
    %7 = arith.maximumf %5, %6 : vector<128x8xf32>
    %c0_5 = arith.constant 0 : index
    %c0_6 = arith.constant 0 : index
    %8 = vector.load %arg7[%c0_5, %c0_6] : memref<128x8xf32, #tpu.memory_space<vmem>>, vector<128x8xf32>
    tpu.vector_store %arg7[%c0_5, %c0_6], %7 {strides = array<i32>} : memref<128x8xf32, #tpu.memory_space<vmem>>, vector<128x8xf32>,
    %c0_7 = arith.constant 0 : index
    %c0_8 = arith.constant 0 : index
    %9 = tpu.strided_load %arg7[%c0_7, %c0_8] {strides = array<i32: 2, 1>} : memref<128x8xf32, #tpu.memory_space<vmem>>, vector<64x8xf32>
    %c1 = arith.constant 1 : index
    %c0_9 = arith.constant 0 : index
    %10 = tpu.strided_load %arg7[%c1, %c0_9] {strides = array<i32: 2, 1>} : memref<128x8xf32, #tpu.memory_space<vmem>>, vector<64x8xf32>
    %11 = arith.maximumf %9, %10 : vector<64x8xf32>
    %c0_10 = arith.constant 0 : index
    %c0_11 = arith.constant 0 : index
    %12 = vector.load %arg5[%c0_10, %c0_11] : memref<64x2xf32, #tpu.memory_space<vmem>>, vector<64x1xf32>
    %c0_12 = arith.constant 0 : index
    %c1_13 = arith.constant 1 : index
    %13 = vector.load %arg5[%c0_12, %c1_13] : memref<64x2xf32, #tpu.memory_space<vmem>>, vector<64x1xf32>
    %c1_i32 = arith.constant 1 : i32
    %14 = tpu.dynamic_rotate %11 by %c1_i32 dim 0 : vector<64x8xf32>, i32 -> vector<64x8xf32>
    %15 = vector.broadcast %12 : vector<64x1xf32> to vector<64x8xf32>
    %16 = arith.mulf %14, %15 : vector<64x8xf32>
    %c63_i32 = arith.constant 63 : i32
    %17 = tpu.dynamic_rotate %11 by %c63_i32 dim 0 : vector<64x8xf32>, i32 -> vector<64x8xf32>
    %18 = vector.broadcast %13 : vector<64x1xf32> to vector<64x8xf32>
    %19 = arith.mulf %17, %18 : vector<64x8xf32>
    %c24 = arith.constant 24 : index
    %c0_14 = arith.constant 0 : index
    %20 = vector.load %arg4[%c24, %c0_14] : memref<160x128xf32, #tpu.memory_space<vmem>>, vector<8x16xf32>
    %cst_15 = arith.constant dense<0.000000e+00> : vector<64x16xf32>
    %21 = tpu.matmul %16, %20, %cst_15 {dimension_numbers = #tpu.dot_dimension_numbers<[1], [0], [0], [1], [0, 0, 1, 1], [], []>} : vector<64x8xf32>, vector<8x16xf32>, vector<64x16xf32> -> vector<64x16xf32>
    %c32 = arith.constant 32 : index
    %c0_16 = arith.constant 0 : index
    %22 = vector.load %arg4[%c32, %c0_16] : memref<160x128xf32, #tpu.memory_space<vmem>>, vector<8x16xf32>
    %cst_17 = arith.constant dense<0.000000e+00> : vector<64x16xf32>
    %23 = tpu.matmul %11, %22, %cst_17 {dimension_numbers = #tpu.dot_dimension_numbers<[1], [0], [0], [1], [0, 0, 1, 1], [], []>} : vector<64x8xf32>, vector<8x16xf32>, vector<64x16xf32> -> vector<64x16xf32>
    %24 = arith.addf %21, %23 : vector<64x16xf32>
    %c40 = arith.constant 40 : index
    %c0_18 = arith.constant 0 : index
    %25 = vector.load %arg4[%c40, %c0_18] : memref<160x128xf32, #tpu.memory_space<vmem>>, vector<8x16xf32>
    %cst_19 = arith.constant dense<0.000000e+00> : vector<64x16xf32>
    %26 = tpu.matmul %19, %25, %cst_19 {dimension_numbers = #tpu.dot_dimension_numbers<[1], [0], [0], [1], [0, 0, 1, 1], [], []>} : vector<64x8xf32>, vector<8x16xf32>, vector<64x16xf32> -> vector<64x16xf32>
    %27 = arith.addf %24, %26 : vector<64x16xf32>
    %c48 = arith.constant 48 : index
    %c0_20 = arith.constant 0 : index
    %28 = vector.load %arg4[%c48, %c0_20] : memref<160x128xf32, #tpu.memory_space<vmem>>, vector<1x16xf32>
    %29 = vector.broadcast %28 : vector<1x16xf32> to vector<64x16xf32>
    %30 = arith.addf %27, %29 : vector<64x16xf32>
    %cst_21 = arith.constant 0.000000e+00 : f32
    %31 = vector.broadcast %cst_21 : f32 to vector<64x16xf32>
    %32 = arith.maximumf %30, %31 : vector<64x16xf32>
    %c0_22 = arith.constant 0 : index
    %c0_23 = arith.constant 0 : index
    %33 = vector.load %arg8[%c0_22, %c0_23] : memref<64x16xf32, #tpu.memory_space<vmem>>, vector<64x16xf32>
    tpu.vector_store %arg8[%c0_22, %c0_23], %32 {strides = array<i32>} : memref<64x16xf32, #tpu.memory_space<vmem>>, vector<64x16xf32>,
    %c0_24 = arith.constant 0 : index
    %c0_25 = arith.constant 0 : index
    %34 = vector.load %arg8[%c0_24, %c0_25] : memref<64x16xf32, #tpu.memory_space<vmem>>, vector<8x16xf32>
    %cst_26 = arith.constant dense<0xFF800000> : vector<16xf32>
    %35 = vector.multi_reduction <maximumf>, %34, %cst_26 [0] : vector<8x16xf32> to vector<16xf32>
    %36 = vector.shape_cast %35 : vector<16xf32> to vector<1x16xf32>
    %c0_27 = arith.constant 0 : index
    %c0_28 = arith.constant 0 : index
    %37 = vector.load %arg9[%c0_27, %c0_28] : memref<8x16xf32, #tpu.memory_space<vmem>>, vector<1x16xf32>
    tpu.vector_store %arg9[%c0_27, %c0_28], %36 {strides = array<i32>} : memref<8x16xf32, #tpu.memory_space<vmem>>, vector<1x16xf32>,
    %c8 = arith.constant 8 : index
    %c0_29 = arith.constant 0 : index
    %38 = vector.load %arg8[%c8, %c0_29] : memref<64x16xf32, #tpu.memory_space<vmem>>, vector<8x16xf32>
    %cst_30 = arith.constant dense<0xFF800000> : vector<16xf32>
    %39 = vector.multi_reduction <maximumf>, %38, %cst_30 [0] : vector<8x16xf32> to vector<16xf32>
    %40 = vector.shape_cast %39 : vector<16xf32> to vector<1x16xf32>
    %c1_31 = arith.constant 1 : index
    %c0_32 = arith.constant 0 : index
    %41 = vector.load %arg9[%c1_31, %c0_32] : memref<8x16xf32, #tpu.memory_space<vmem>>, vector<1x16xf32>
    tpu.vector_store %arg9[%c1_31, %c0_32], %40 {strides = array<i32>} : memref<8x16xf32, #tpu.memory_space<vmem>>, vector<1x16xf32>,
    %c16_33 = arith.constant 16 : index
    %c0_34 = arith.constant 0 : index
    %42 = vector.load %arg8[%c16_33, %c0_34] : memref<64x16xf32, #tpu.memory_space<vmem>>, vector<8x16xf32>
    %cst_35 = arith.constant dense<0xFF800000> : vector<16xf32>
    %43 = vector.multi_reduction <maximumf>, %42, %cst_35 [0] : vector<8x16xf32> to vector<16xf32>
    %44 = vector.shape_cast %43 : vector<16xf32> to vector<1x16xf32>
    %c2 = arith.constant 2 : index
    %c0_36 = arith.constant 0 : index
    %45 = vector.load %arg9[%c2, %c0_36] : memref<8x16xf32, #tpu.memory_space<vmem>>, vector<1x16xf32>
    tpu.vector_store %arg9[%c2, %c0_36], %44 {strides = array<i32>} : memref<8x16xf32, #tpu.memory_space<vmem>>, vector<1x16xf32>,
    %c24_37 = arith.constant 24 : index
    %c0_38 = arith.constant 0 : index
    %46 = vector.load %arg8[%c24_37, %c0_38] : memref<64x16xf32, #tpu.memory_space<vmem>>, vector<8x16xf32>
    %cst_39 = arith.constant dense<0xFF800000> : vector<16xf32>
    %47 = vector.multi_reduction <maximumf>, %46, %cst_39 [0] : vector<8x16xf32> to vector<16xf32>
    %48 = vector.shape_cast %47 : vector<16xf32> to vector<1x16xf32>
    %c3 = arith.constant 3 : index
    %c0_40 = arith.constant 0 : index
    %49 = vector.load %arg9[%c3, %c0_40] : memref<8x16xf32, #tpu.memory_space<vmem>>, vector<1x16xf32>
    tpu.vector_store %arg9[%c3, %c0_40], %48 {strides = array<i32>} : memref<8x16xf32, #tpu.memory_space<vmem>>, vector<1x16xf32>,
    %c32_41 = arith.constant 32 : index
    %c0_42 = arith.constant 0 : index
    %50 = vector.load %arg8[%c32_41, %c0_42] : memref<64x16xf32, #tpu.memory_space<vmem>>, vector<8x16xf32>
    %cst_43 = arith.constant dense<0xFF800000> : vector<16xf32>
    %51 = vector.multi_reduction <maximumf>, %50, %cst_43 [0] : vector<8x16xf32> to vector<16xf32>
    %52 = vector.shape_cast %51 : vector<16xf32> to vector<1x16xf32>
    %c4 = arith.constant 4 : index
    %c0_44 = arith.constant 0 : index
    %53 = vector.load %arg9[%c4, %c0_44] : memref<8x16xf32, #tpu.memory_space<vmem>>, vector<1x16xf32>
    tpu.vector_store %arg9[%c4, %c0_44], %52 {strides = array<i32>} : memref<8x16xf32, #tpu.memory_space<vmem>>, vector<1x16xf32>,
    %c40_45 = arith.constant 40 : index
    %c0_46 = arith.constant 0 : index
    %54 = vector.load %arg8[%c40_45, %c0_46] : memref<64x16xf32, #tpu.memory_space<vmem>>, vector<8x16xf32>
    %cst_47 = arith.constant dense<0xFF800000> : vector<16xf32>
    %55 = vector.multi_reduction <maximumf>, %54, %cst_47 [0] : vector<8x16xf32> to vector<16xf32>
    %56 = vector.shape_cast %55 : vector<16xf32> to vector<1x16xf32>
    %c5 = arith.constant 5 : index
    %c0_48 = arith.constant 0 : index
    %57 = vector.load %arg9[%c5, %c0_48] : memref<8x16xf32, #tpu.memory_space<vmem>>, vector<1x16xf32>
    tpu.vector_store %arg9[%c5, %c0_48], %56 {strides = array<i32>} : memref<8x16xf32, #tpu.memory_space<vmem>>, vector<1x16xf32>,
    %c48_49 = arith.constant 48 : index
    %c0_50 = arith.constant 0 : index
    %58 = vector.load %arg8[%c48_49, %c0_50] : memref<64x16xf32, #tpu.memory_space<vmem>>, vector<8x16xf32>
    %cst_51 = arith.constant dense<0xFF800000> : vector<16xf32>
    %59 = vector.multi_reduction <maximumf>, %58, %cst_51 [0] : vector<8x16xf32> to vector<16xf32>
    %60 = vector.shape_cast %59 : vector<16xf32> to vector<1x16xf32>
    %c6 = arith.constant 6 : index
    %c0_52 = arith.constant 0 : index
    %61 = vector.load %arg9[%c6, %c0_52] : memref<8x16xf32, #tpu.memory_space<vmem>>, vector<1x16xf32>
    tpu.vector_store %arg9[%c6, %c0_52], %60 {strides = array<i32>} : memref<8x16xf32, #tpu.memory_space<vmem>>, vector<1x16xf32>,
    %c56 = arith.constant 56 : index
    %c0_53 = arith.constant 0 : index
    %62 = vector.load %arg8[%c56, %c0_53] : memref<64x16xf32, #tpu.memory_space<vmem>>, vector<8x16xf32>
    %cst_54 = arith.constant dense<0xFF800000> : vector<16xf32>
    %63 = vector.multi_reduction <maximumf>, %62, %cst_54 [0] : vector<8x16xf32> to vector<16xf32>
    %64 = vector.shape_cast %63 : vector<16xf32> to vector<1x16xf32>
    %c7 = arith.constant 7 : index
    %c0_55 = arith.constant 0 : index
    %65 = vector.load %arg9[%c7, %c0_55] : memref<8x16xf32, #tpu.memory_space<vmem>>, vector<1x16xf32>
    tpu.vector_store %arg9[%c7, %c0_55], %64 {strides = array<i32>} : memref<8x16xf32, #tpu.memory_space<vmem>>, vector<1x16xf32>,
    %c0_56 = arith.constant 0 : index
    %c0_57 = arith.constant 0 : index
    %66 = vector.load %arg9[%c0_56, %c0_57] : memref<8x16xf32, #tpu.memory_space<vmem>>, vector<8x16xf32>
    %c0_58 = arith.constant 0 : index
    %c0_59 = arith.constant 0 : index
    %67 = vector.load %arg2[%c0_58, %c0_59] : memref<8x6xf32, #tpu.memory_space<vmem>>, vector<8x6xf32>
    %c56_60 = arith.constant 56 : index
    %c0_61 = arith.constant 0 : index
    %68 = vector.load %arg4[%c56_60, %c0_61] : memref<160x128xf32, #tpu.memory_space<vmem>>, vector<6x16xf32>
    %cst_62 = arith.constant dense<0.000000e+00> : vector<8x16xf32>
    %69 = tpu.matmul %67, %68, %cst_62 {dimension_numbers = #tpu.dot_dimension_numbers<[1], [0], [0], [1], [0, 0, 1, 1], [], []>} : vector<8x6xf32>, vector<6x16xf32>, vector<8x16xf32> -> vector<8x16xf32>
    %c64 = arith.constant 64 : index
    %c0_63 = arith.constant 0 : index
    %70 = vector.load %arg4[%c64, %c0_63] : memref<160x128xf32, #tpu.memory_space<vmem>>, vector<1x16xf32>
    %71 = vector.broadcast %70 : vector<1x16xf32> to vector<8x16xf32>
    %72 = arith.addf %69, %71 : vector<8x16xf32>
    %cst_64 = arith.constant 0.000000e+00 : f32
    %73 = vector.broadcast %cst_64 : f32 to vector<8x16xf32>
    %74 = arith.maximumf %72, %73 : vector<8x16xf32>
    %c72 = arith.constant 72 : index
    %c0_65 = arith.constant 0 : index
    %75 = vector.load %arg4[%c72, %c0_65] : memref<160x128xf32, #tpu.memory_space<vmem>>, vector<16x32xf32>
    %cst_66 = arith.constant dense<0.000000e+00> : vector<8x32xf32>
    %76 = tpu.matmul %66, %75, %cst_66 {dimension_numbers = #tpu.dot_dimension_numbers<[1], [0], [0], [1], [0, 0, 1, 1], [], []>} : vector<8x16xf32>, vector<16x32xf32>, vector<8x32xf32> -> vector<8x32xf32>
    %c88 = arith.constant 88 : index
    %c0_67 = arith.constant 0 : index
    %77 = vector.load %arg4[%c88, %c0_67] : memref<160x128xf32, #tpu.memory_space<vmem>>, vector<16x32xf32>
    %cst_68 = arith.constant dense<0.000000e+00> : vector<8x32xf32>
    %78 = tpu.matmul %74, %77, %cst_68 {dimension_numbers = #tpu.dot_dimension_numbers<[1], [0], [0], [1], [0, 0, 1, 1], [], []>} : vector<8x16xf32>, vector<16x32xf32>, vector<8x32xf32> -> vector<8x32xf32>
    %79 = arith.addf %76, %78 : vector<8x32xf32>
    %c104 = arith.constant 104 : index
    %c0_69 = arith.constant 0 : index
    %80 = vector.load %arg4[%c104, %c0_69] : memref<160x128xf32, #tpu.memory_space<vmem>>, vector<1x32xf32>
    %81 = vector.broadcast %80 : vector<1x32xf32> to vector<8x32xf32>
    %82 = arith.addf %79, %81 : vector<8x32xf32>
    %cst_70 = arith.constant 0.000000e+00 : f32
    %83 = vector.broadcast %cst_70 : f32 to vector<8x32xf32>
    %84 = arith.maximumf %82, %83 : vector<8x32xf32>
    %c112 = arith.constant 112 : index
    %c0_71 = arith.constant 0 : index
    %85 = vector.load %arg4[%c112, %c0_71] : memref<160x128xf32, #tpu.memory_space<vmem>>, vector<32x128xf32>
    %cst_72 = arith.constant dense<0.000000e+00> : vector<8x128xf32>
    %86 = tpu.matmul %84, %85, %cst_72 {dimension_numbers = #tpu.dot_dimension_numbers<[1], [0], [0], [1], [0, 0, 1, 1], [], []>} : vector<8x32xf32>, vector<32x128xf32>, vector<8x128xf32> -> vector<8x128xf32>
    %c144 = arith.constant 144 : index
    %c0_73 = arith.constant 0 : index
    %87 = vector.load %arg4[%c144, %c0_73] : memref<160x128xf32, #tpu.memory_space<vmem>>, vector<1x128xf32>
    %88 = vector.broadcast %87 : vector<1x128xf32> to vector<8x128xf32>
    %89 = arith.addf %86, %88 : vector<8x128xf32>
    %c0_74 = arith.constant 0 : index
    %c0_75 = arith.constant 0 : index
    %90 = vector.load %arg3[%c0_74, %c0_75] : memref<8x6xf32, #tpu.memory_space<vmem>>, vector<8x6xf32>
    %c152 = arith.constant 152 : index
    %c0_76 = arith.constant 0 : index
    %91 = vector.load %arg4[%c152, %c0_76] : memref<160x128xf32, #tpu.memory_space<vmem>>, vector<1x6xf32>
    %92 = vector.broadcast %91 : vector<1x6xf32> to vector<8x6xf32>
    %93 = arith.mulf %90, %92 : vector<8x6xf32>
    %cst_77 = arith.constant dense<0.000000e+00> : vector<8xf32>
    %94 = vector.multi_reduction <add>, %93, %cst_77 [1] : vector<8x6xf32> to vector<8xf32>
    %95 = vector.shape_cast %94 : vector<8xf32> to vector<8x1xf32>
    %96 = vector.broadcast %95 : vector<8x1xf32> to vector<8x128xf32>
    %97 = arith.addf %89, %96 : vector<8x128xf32>
    %c0_78 = arith.constant 0 : index
    %c0_79 = arith.constant 0 : index
    %98 = vector.load %arg6[%c0_78, %c0_79] : memref<8x128xf32, #tpu.memory_space<vmem>>, vector<8x128xf32>
    tpu.vector_store %arg6[%c0_78, %c0_79], %97 {strides = array<i32>} : memref<8x128xf32, #tpu.memory_space<vmem>>, vector<8x128xf32>,
    return
  }
  func.func @transform_0(%arg0: i32) -> (i32, i32) {
    %c0_i32 = arith.constant 0 : i32
    %c0_i32_0 = arith.constant 0 : i32
    return %arg0, %c0_i32 : i32, i32
  }
  func.func @transform_1(%arg0: i32) -> (i32, i32) {
    %c0_i32 = arith.constant 0 : i32
    %c0_i32_0 = arith.constant 0 : i32
    return %arg0, %c0_i32 : i32, i32
  }
  func.func @transform_2(%arg0: i32) -> (i32, i32) {
    %c0_i32 = arith.constant 0 : i32
    %c0_i32_0 = arith.constant 0 : i32
    return %arg0, %c0_i32 : i32, i32
  }
  func.func @transform_3(%arg0: i32) -> (i32, i32) {
    %c0_i32 = arith.constant 0 : i32
    %c0_i32_0 = arith.constant 0 : i32
    %c0_i32_1 = arith.constant 0 : i32
    return %c0_i32, %c0_i32_0 : i32, i32
  }
  func.func @transform_4(%arg0: i32) -> (i32, i32) {
    %c0_i32 = arith.constant 0 : i32
    %c0_i32_0 = arith.constant 0 : i32
    %c0_i32_1 = arith.constant 0 : i32
    return %c0_i32, %c0_i32_0 : i32, i32
  }
  func.func @transform_5(%arg0: i32) -> (i32, i32) {
    %c0_i32 = arith.constant 0 : i32
    %c0_i32_0 = arith.constant 0 : i32
    return %arg0, %c0_i32 : i32, i32
  }
}

</mosaic_0001>

<llo_original>
// kernel: tpu_custom_call.1
$region0: #{tpu_custom_call.1}
  #allocation0 [shape = 'u32[]', space=smem, size = 0x4, offset = 0x4, fixed_abs, tag = 'smem constant byte address 0x4 - core index']
  #allocation1 [shape = 'u32[144,128]{1,0:T(1,128)}', space=vmem, size = 0x12000, scoped, tag = 'internal scratch']
  #allocation2 [shape = 'f32[128,8]{1,0:T(8,128)}', space=vmem, size = 0x10000, scoped, tag = 'scratch operand']
  #allocation3 [shape = 'f32[64,16]{1,0:T(8,128)}', space=vmem, size = 0x8000, scoped, tag = 'scratch operand']
  #allocation4 [shape = 'f32[8,16]{1,0:T(8,128)}', space=vmem, size = 0x1000, scoped, tag = 'scratch operand']
  %s0 = inlined_call_operand.vmem [shape: f32[256,12], index: 0, kind: input, shape index: {}]
  %s1 = inlined_call_operand.vmem [shape: f32[16,6], index: 1, kind: input, shape index: {}]
  %s2 = inlined_call_operand.vmem [shape: f32[16,6], index: 2, kind: input, shape index: {}]
  %s3 = inlined_call_operand.vmem [shape: f32[160,128], index: 3, kind: input, shape index: {}]
  %s4 = inlined_call_operand.vmem [shape: f32[64,2], index: 4, kind: input, shape index: {}]
  %s5 = inlined_call_operand.hbm [shape: f32[16,128], index: 5, kind: output, shape index: {}]
  %s6 = sld [smem:[#allocation0]]
  $region53: #{tpu_custom_call.1} parent=0
    _
  %s8 = ssub.s32 1, %s6
  %s9 = scalar_select 0, %s8, %s6
  $region1: #{tpu_custom_call.1} parent=0
    #allocation5 [shape = 'u8[8192]{0}', space=vmem, size = 0x2000, scoped, tag = 'output window, operand 0']
    #allocation6 [shape = 's32[2]{0}', space=sflag, size = 0x8, scoped, tag = 'scoped memory for tpu_custom_call.1']
    %10 = vsyncpa [#allocation6], 0
    %s11 = scalar_lea.sflag [#allocation6], 1
    %12 = vsyncpa %s11, 0
    loop: start=0, step=1, limit=4
    $region2: #{tpu_custom_call.1} parent=1 // loop_pre_header
      _
    $region3: #{tpu_custom_call.1} parent=1 // loop_header
      %s14 = sphi 0, %s18
      %p15 = scmp.ge.s32.totalorder %s14, 4
      %s24 = sphi 0, %s26
      %s27 = sphi 0, %s24
      %s28 = sphi 0, %s27
      %s44 = sphi 0, %s28
      %s50 = sphi 0, %s52
      %s53 = sphi 0, %s50
      %s54 = sphi 0, %s53
      %s70 = sphi 0, %s54
      %s76 = sphi 0, %s78
      %s79 = sphi 0, %s76
      %s80 = sphi 0, %s79
      %s96 = sphi 0, %s80
      %s100 = sphi 0, %s100
      %s102 = sphi 0, %s100
      %s103 = sphi 0, %s102
      %s117 = sphi 0, %s103
      %s121 = sphi 0, %s121
      %s123 = sphi 0, %s121
      %s124 = sphi 0, %s123
      %s138 = sphi 0, %s124
      %s144 = sphi 0, %s146
      %s147 = sphi 0, %s144
      %s148 = sphi 0, %s147
      %s164 = sphi 0, %s148
    $region4: #{tpu_custom_call.1} parent=1 // loop_header_branch
      %17 = sbr.rel (%p15) target = $region8
    $region5: #{tpu_custom_call.1} parent=1 // loop_body
      %s19 = ssub.s32 %s14, 1
      %s20 = ssub.s32 %s14, 2
      %s21 = sadd.s32 %s14, 1
      %s22 = ssub.s32 %s14, %s21
      %p23 = scmp.eq.s32.totalorder %s22, 0
      %s25 = sadd.s32 %s24, 1
      %s26 = scalar_select %p23, %s24, %s25
      %p29 = pneg %p23
      %p30 = scmp.eq.s32.totalorder %s14, 1
      %p31 = por %p29, %p30
      %p32 = scmp.ne.s32.totalorder %s24, %s27
      %p33 = scmp.eq.s32.totalorder %s14, 0
      %p34 = por %p32, %p33
      %p35 = scmp.ne.s32.totalorder %s24, %s27
      %p36 = scmp.eq.s32.totalorder %s19, 1
      %p37 = por %p35, %p36
      %p38 = scmp.ne.s32.totalorder %s27, %s28
      %p39 = scmp.eq.s32.totalorder %s19, 0
      %p40 = por %p38, %p39
      %p41 = scmp.ne.s32.totalorder %s27, %s28
      %p42 = scmp.eq.s32.totalorder %s20, 1
      %p43 = por %p41, %p42
      %p45 = scmp.ne.s32.totalorder %s28, %s44
      %p46 = scmp.eq.s32.totalorder %s20, 0
      %p47 = por %p45, %p46
      %s48 = ssub.s32 %s14, %s21
      %p49 = scmp.eq.s32.totalorder %s48, 0
      %s51 = sadd.s32 %s50, 1
      %s52 = scalar_select %p49, %s50, %s51
      %p55 = pneg %p49
      %p56 = scmp.eq.s32.totalorder %s14, 1
      %p57 = por %p55, %p56
      %p58 = scmp.ne.s32.totalorder %s50, %s53
      %p59 = scmp.eq.s32.totalorder %s14, 0
      %p60 = por %p58, %p59
      %p61 = scmp.ne.s32.totalorder %s50, %s53
      %p62 = scmp.eq.s32.totalorder %s19, 1
      %p63 = por %p61, %p62
      %p64 = scmp.ne.s32.totalorder %s53, %s54
      %p65 = scmp.eq.s32.totalorder %s19, 0
      %p66 = por %p64, %p65
      %p67 = scmp.ne.s32.totalorder %s53, %s54
      %p68 = scmp.eq.s32.totalorder %s20, 1
      %p69 = por %p67, %p68
      %p71 = scmp.ne.s32.totalorder %s54, %s70
      %p72 = scmp.eq.s32.totalorder %s20, 0
      %p73 = por %p71, %p72
      %s74 = ssub.s32 %s14, %s21
      %p75 = scmp.eq.s32.totalorder %s74, 0
      %s77 = sadd.s32 %s76, 1
      %s78 = scalar_select %p75, %s76, %s77
      %p81 = pneg %p75
      %p82 = scmp.eq.s32.totalorder %s14, 1
      %p83 = por %p81, %p82
      %p84 = scmp.ne.s32.totalorder %s76, %s79
      %p85 = scmp.eq.s32.totalorder %s14, 0
      %p86 = por %p84, %p85
      %p87 = scmp.ne.s32.totalorder %s76, %s79
      %p88 = scmp.eq.s32.totalorder %s19, 1
      %p89 = por %p87, %p88
      %p90 = scmp.ne.s32.totalorder %s79, %s80
      %p91 = scmp.eq.s32.totalorder %s19, 0
      %p92 = por %p90, %p91
      %p93 = scmp.ne.s32.totalorder %s79, %s80
      %p94 = scmp.eq.s32.totalorder %s20, 1
      %p95 = por %p93, %p94
      %p97 = scmp.ne.s32.totalorder %s80, %s96
      %p98 = scmp.eq.s32.totalorder %s20, 0
      %p99 = por %p97, %p98
      %s101 = sadd.s32 %s100, 1
      %p104 = scmp.eq.s32.totalorder %s14, 1
      %p105 = scmp.ne.s32.totalorder %s100, %s102
      %p106 = scmp.eq.s32.totalorder %s14, 0
      %p107 = por %p105, %p106
      %p108 = scmp.ne.s32.totalorder %s100, %s102
      %p109 = scmp.eq.s32.totalorder %s19, 1
      %p110 = por %p108, %p109
      %p111 = scmp.ne.s32.totalorder %s102, %s103
      %p112 = scmp.eq.s32.totalorder %s19, 0
      %p113 = por %p111, %p112
      %p114 = scmp.ne.s32.totalorder %s102, %s103
      %p115 = scmp.eq.s32.totalorder %s20, 1
      %p116 = por %p114, %p115
      %p118 = scmp.ne.s32.totalorder %s103, %s117
      %p119 = scmp.eq.s32.totalorder %s20, 0
      %p120 = por %p118, %p119
      %s122 = sadd.s32 %s121, 1
      %p125 = scmp.eq.s32.totalorder %s14, 1
      %p126 = scmp.ne.s32.totalorder %s121, %s123
      %p127 = scmp.eq.s32.totalorder %s14, 0
      %p128 = por %p126, %p127
      %p129 = scmp.ne.s32.totalorder %s121, %s123
      %p130 = scmp.eq.s32.totalorder %s19, 1
      %p131 = por %p129, %p130
      %p132 = scmp.ne.s32.totalorder %s123, %s124
      %p133 = scmp.eq.s32.totalorder %s19, 0
      %p134 = por %p132, %p133
      %p135 = scmp.ne.s32.totalorder %s123, %s124
      %p136 = scmp.eq.s32.totalorder %s20, 1
      %p137 = por %p135, %p136
      %p139 = scmp.ne.s32.totalorder %s124, %s138
      %p140 = scmp.eq.s32.totalorder %s20, 0
      %p141 = por %p139, %p140
      %s142 = ssub.s32 %s14, %s21
      %p143 = scmp.eq.s32.totalorder %s142, 0
      %s145 = sadd.s32 %s144, 1
      %s146 = scalar_select %p143, %s144, %s145
      %p149 = pneg %p143
      %p150 = scmp.eq.s32.totalorder %s14, 1
      %p151 = por %p149, %p150
      %p152 = scmp.ne.s32.totalorder %s144, %s147
      %p153 = scmp.eq.s32.totalorder %s14, 0
      %p154 = por %p152, %p153
      %p155 = scmp.ne.s32.totalorder %s144, %s147
      %p156 = scmp.eq.s32.totalorder %s19, 1
      %p157 = por %p155, %p156
      %p158 = scmp.ne.s32.totalorder %s147, %s148
      %p159 = scmp.eq.s32.totalorder %s19, 0
      %p160 = por %p158, %p159
      %p161 = scmp.ne.s32.totalorder %s147, %s148
      %p162 = scmp.eq.s32.totalorder %s20, 1
      %p163 = por %p161, %p162
      %p165 = scmp.ne.s32.totalorder %s148, %s164
      %p166 = scmp.eq.s32.totalorder %s20, 0
      %p167 = por %p165, %p166
      %p168 = scmp.le.s32.totalorder 1, %s14
      %p169 = scmp.lt.s32.totalorder %s14, 3
      %p170 = pnand %p168, %p169
      %p171 = pneg %p170
      // Predicated region
      $region9: #{tpu_custom_call.1} parent=5 // pred_check
        _
      $region10: #{tpu_custom_call.1} parent=5 // pred_check_branch
        %173 = sbr.rel (%p170) target = $region12
      $region11: #{tpu_custom_call.1} parent=5 // pred_region
        %s174 = ssub.s32 %s14, 1
        // Predicated region
        $region13: #{tpu_custom_call.1} parent=11 // pred_check
          %p175 = pneg %p113
        $region14: #{tpu_custom_call.1} parent=11 // pred_check_branch
          %177 = sbr.rel (%p175) target = $region16
        $region15: #{tpu_custom_call.1} parent=11 // pred_region
          _
        $region16: #{tpu_custom_call.1} parent=11 // pred_fallthru
          _
        // Predicated region
        $region17: #{tpu_custom_call.1} parent=11 // pred_check
          %p178 = pneg %p134
        $region18: #{tpu_custom_call.1} parent=11 // pred_check_branch
          %180 = sbr.rel (%p178) target = $region20
        $region19: #{tpu_custom_call.1} parent=11 // pred_region
          _
        $region20: #{tpu_custom_call.1} parent=11 // pred_fallthru
          _
      $region12: #{tpu_custom_call.1} parent=5 // pred_fallthru
        _
      %p181 = scmp.lt.s32.totalorder %s14, 2
      // Predicated region
      $region21: #{tpu_custom_call.1} parent=5 // pred_check
        %p182 = pneg %p181
      $region22: #{tpu_custom_call.1} parent=5 // pred_check_branch
        %184 = sbr.rel (%p182) target = $region24
      $region23: #{tpu_custom_call.1} parent=5 // pred_region
        // Predicated region
        $region25: #{tpu_custom_call.1} parent=23 // pred_check
          %p185 = pneg %p34
        $region26: #{tpu_custom_call.1} parent=23 // pred_check_branch
          %187 = sbr.rel (%p185) target = $region28
        $region27: #{tpu_custom_call.1} parent=23 // pred_region
          %s188 = smul.u32 16, %s14
          %p189 = scmp.lt.s32.totalorder %s188, 31
          %s190 = scalar_select %p189, %s188, 31
          %s191 = smul.addr %s190, 8
          %s192 = scalar_lea.vmem %s0, %s191
          %s193 = smul.u32 16, %s14
        $region28: #{tpu_custom_call.1} parent=23 // pred_fallthru
          _
        // Predicated region
        $region29: #{tpu_custom_call.1} parent=23 // pred_check
          %p194 = pneg %p60
        $region30: #{tpu_custom_call.1} parent=23 // pred_check_branch
          %196 = sbr.rel (%p194) target = $region32
        $region31: #{tpu_custom_call.1} parent=23 // pred_region
          %p197 = scmp.lt.s32.totalorder %s14, 1
          %s198 = scalar_select %p197, %s14, 1
          %s199 = smul.addr %s198, 8
          %s200 = scalar_lea.vmem %s1, %s199
        $region32: #{tpu_custom_call.1} parent=23 // pred_fallthru
          _
        // Predicated region
        $region33: #{tpu_custom_call.1} parent=23 // pred_check
          %p201 = pneg %p86
        $region34: #{tpu_custom_call.1} parent=23 // pred_check_branch
          %203 = sbr.rel (%p201) target = $region36
        $region35: #{tpu_custom_call.1} parent=23 // pred_region
          %p204 = scmp.lt.s32.totalorder %s14, 1
          %s205 = scalar_select %p204, %s14, 1
          %s206 = smul.addr %s205, 8
          %s207 = scalar_lea.vmem %s2, %s206
        $region36: #{tpu_custom_call.1} parent=23 // pred_fallthru
          _
      $region24: #{tpu_custom_call.1} parent=5 // pred_fallthru
        _
      %p208 = scmp.le.s32.totalorder 1, %s14
      %p209 = scmp.lt.s32.totalorder %s14, 3
      %p210 = pnand %p208, %p209
      %p211 = pneg %p210
      // Predicated region
      $region37: #{tpu_custom_call.1} parent=5 // pred_check
        _
      $region38: #{tpu_custom_call.1} parent=5 // pred_check_branch
        %213 = sbr.rel (%p210) target = $region40
      $region39: #{tpu_custom_call.1} parent=5 // pred_region
        %s214 = ssub.s32 %s14, 1
        %s215 = smul.u32 16, %s19
        %p216 = scmp.lt.s32.totalorder %s215, 31
        %s217 = scalar_select %p216, %s215, 31
        %s218 = smul.addr %s217, 8
        %s219 = scalar_lea.vmem %s0, %s218
        %p220 = pneg %p40
        %p221 = pneg %p37
        %p222 = scmp.lt.s32.totalorder %s19, 1
        %s223 = scalar_select %p222, %s19, 1
        %s224 = smul.addr %s223, 8
        %s225 = scalar_lea.vmem %s1, %s224
        %p226 = pneg %p66
        %p227 = pneg %p63
        %p228 = scmp.lt.s32.totalorder %s19, 1
        %s229 = scalar_select %p228, %s19, 1
        %s230 = smul.addr %s229, 8
        %s231 = scalar_lea.vmem %s2, %s230
        %p232 = pneg %p92
        %p233 = pneg %p89
        %p234 = pneg %p113
        %p235 = pneg %p110
        %p236 = pneg %p134
        %p237 = pneg %p131
        %p238 = pneg %p160
        %p239 = pneg %p157
        %s240 = sand.u32 %s147, 1
        %s241 = scalar_lea.sflag [#allocation6], %s240
        %s242 = sand.u32 %s147, 1
        %s243 = smul.addr %s242, 8
        %s244 = scalar_lea.vmem [#allocation5], %s243
        %s245 = smul.u32 16, %s19
        %p246 = scmp.lt.s32.totalorder %s245, 31
        %s247 = scalar_select %p246, %s245, 31
        %s248 = smul.addr %s247, 8
        %s249 = scalar_lea.vmem %s0, %s248
        %s250 = smul.u32 16, %s19
        %p251 = scmp.lt.s32.totalorder %s19, 1
        %s252 = scalar_select %p251, %s19, 1
        %s253 = smul.addr %s252, 8
        %s254 = scalar_lea.vmem %s1, %s253
        %p255 = scmp.lt.s32.totalorder %s19, 1
        %s256 = scalar_select %p255, %s19, 1
        %s257 = smul.addr %s256, 8
        %s258 = scalar_lea.vmem %s2, %s257
        %v259 = vld [vmem:[%s249] sm:$0xff]
        %v260 = vld [vmem:[%s249 + $0x8] sm:$0xff]
        %v261 = vld [vmem:[%s249 + $0x10] sm:$0xff]
        %v262 = vld [vmem:[%s249 + $0x18] sm:$0xff]
        %v263 = vld [vmem:[%s249 + $0x20] sm:$0xff]
        %v264 = vld [vmem:[%s249 + $0x28] sm:$0xff]
        %v265 = vld [vmem:[%s249 + $0x30] sm:$0xff]
        %v266 = vld [vmem:[%s249 + $0x38] sm:$0xff]
        %v267 = vld [vmem:[%s249 + $0x40] sm:$0xff]
        %v268 = vld [vmem:[%s249 + $0x48] sm:$0xff]
        %v269 = vld [vmem:[%s249 + $0x50] sm:$0xff]
        %v270 = vld [vmem:[%s249 + $0x58] sm:$0xff]
        %v271 = vld [vmem:[%s249 + $0x60] sm:$0xff]
        %v272 = vld [vmem:[%s249 + $0x68] sm:$0xff]
        %v273 = vld [vmem:[%s249 + $0x70] sm:$0xff]
        %v274 = vld [vmem:[%s249 + $0x78] sm:$0xff]
        %v275 = vld [vmem:[%s3] sm:$0xff]
        %v276 = vld [vmem:[%s3 + $0x8] sm:$0xf]
        %v277 = vld [vmem:[%s3 + $0x10] sm:$0x1]
        %v278 = vlaneseq
        %v279 = vshrl.u32 %v278, 7
        %v280 = vsub.s32 0, %v279
        %v281 = vrot.slane %v277, %v280
        %vm282 = vcmask 97280
        %v284 = vsel %vm282, %v259, 0
        %v287 = vsel %vm282, %v260, 0
        %v290 = vsel %vm282, %v261, 0
        %v293 = vsel %vm282, %v262, 0
        %v296 = vsel %vm282, %v263, 0
        %v299 = vsel %vm282, %v264, 0
        %v302 = vsel %vm282, %v265, 0
        %v305 = vsel %vm282, %v266, 0
        %v308 = vsel %vm282, %v267, 0
        %v311 = vsel %vm282, %v268, 0
        %v314 = vsel %vm282, %v269, 0
        %v317 = vsel %vm282, %v270, 0
        %v320 = vsel %vm282, %v271, 0
        %v323 = vsel %vm282, %v272, 0
        %v326 = vsel %vm282, %v273, 0
        %v329 = vsel %vm282, %v274, 0
        %vm331 = vcmask 1043456
        %v333 = vsel %vm331, %v276, 0
        %335 = vmatprep.subr.mxu0 0.0
        %336 = vmatpush1.msra.mxu0 %v275
        %337 = vmatprep.subr.mxu0 0.0
        %338 = vmatpush1.msra.mxu0 %v333
        %339 = vmatprep.subr.mxu0 0.0
        %340 = vmatpush1.msra.mxu0 0.0
        %341 = vmatprep.subr.mxu0 0.0
        %342 = vmatpush1.msra.mxu0 0.0
        %343 = vmatprep.subr.mxu0 0.0
        %344 = vmatpush1.msra.mxu0 0.0
        %345 = vmatprep.subr.mxu0 0.0
        %346 = vmatpush1.msra.mxu0 0.0
        %347 = vmatprep.subr.mxu0 0.0
        %348 = vmatpush1.msra.mxu0 0.0
        %349 = vmatprep.subr.mxu0 0.0
        %350 = vmatpush1.msra.mxu0 0.0
        %351 = vmatprep.subr.mxu0 0.0
        %352 = vmatpush1.msra.mxu0 0.0
        %353 = vmatprep.subr.mxu0 0.0
        %354 = vmatpush1.msra.mxu0 0.0
        %355 = vmatprep.subr.mxu0 0.0
        %356 = vmatpush1.msra.mxu0 0.0
        %357 = vmatprep.subr.mxu0 0.0
        %358 = vmatpush1.msra.mxu0 0.0
        %359 = vmatprep.subr.mxu0 0.0
        %360 = vmatpush1.msra.mxu0 0.0
        %361 = vmatprep.subr.mxu0 0.0
        %362 = vmatpush1.msra.mxu0 0.0
        %363 = vmatprep.subr.mxu0 0.0
        %364 = vmatpush1.msra.mxu0 0.0
        %365 = vmatprep.subr.mxu0 0.0
        %366 = vmatpush1.msra.mxu0 0.0
        %367 = vmatprep.subr.mxu0 0.0
        %368 = vmatpush1.msra.mxu0 0.0
        %369 = vmatprep.subr.mxu0 0.0
        %370 = vmatpush1.msra.mxu0 0.0
        %371 = vmatprep.subr.mxu0 0.0
        %372 = vmatpush1.msra.mxu0 0.0
        %373 = vmatprep.subr.mxu0 0.0
        %374 = vmatpush1.msra.mxu0 0.0
        %375 = vmatprep.subr.mxu0 0.0
        %376 = vmatpush1.msra.mxu0 0.0
        %377 = vmatprep.subr.mxu0 0.0
        %378 = vmatpush1.msra.mxu0 0.0
        %379 = vmatprep.subr.mxu0 0.0
        %380 = vmatpush1.msra.mxu0 0.0
        %381 = vmatprep.subr.mxu0 0.0
        %382 = vmatpush1.msra.mxu0 0.0
        %383 = vmatprep.subr.mxu0 0.0
        %384 = vmatpush1.msra.mxu0 0.0
        %385 = vmatprep.subr.mxu0 0.0
        %386 = vmatpush1.msra.mxu0 0.0
        %387 = vmatprep.subr.mxu0 0.0
        %388 = vmatpush1.msra.mxu0 0.0
        %389 = vmatprep.subr.mxu0 0.0
        %390 = vmatpush1.msra.mxu0 0.0
        %391 = vmatprep.subr.mxu0 0.0
        %392 = vmatpush1.msra.mxu0 0.0
        %393 = vmatprep.subr.mxu0 0.0
        %394 = vmatpush1.msra.mxu0 0.0
        %395 = vmatprep.subr.mxu0 0.0
        %396 = vmatpush1.msra.mxu0 0.0
        %397 = vmatprep.subr.mxu0 0.0
        %398 = vmatpush1.msra.mxu0 0.0
        %399 = vmatprep.mubr.f32.mxu0 0.0
        %400 = vmatmul.mubr.f32.gmra.mrb[0].mxu0 %v284
        %v401 = vpop.f32.mrb[0].mxu0
        %v402 = vadd.f32 %v281, %v401
        %v403 = vpop.f32.mrb[0].mxu0
        %404 = vmatprep.mubr.f32.mxu0 0.0
        %405 = vmatmul.mubr.f32.gmra.mrb[0].mxu0 %v287
        %v406 = vpop.f32.mrb[0].mxu0
        %v407 = vadd.f32 %v281, %v406
        %v408 = vpop.f32.mrb[0].mxu0
        %409 = vmatprep.mubr.f32.mxu0 0.0
        %410 = vmatmul.mubr.f32.gmra.mrb[0].mxu0 %v290
        %v411 = vpop.f32.mrb[0].mxu0
        %v412 = vadd.f32 %v281, %v411
        %v413 = vpop.f32.mrb[0].mxu0
        %414 = vmatprep.mubr.f32.mxu0 0.0
        %415 = vmatmul.mubr.f32.gmra.mrb[0].mxu0 %v293
        %v416 = vpop.f32.mrb[0].mxu0
        %v417 = vadd.f32 %v281, %v416
        %v418 = vpop.f32.mrb[0].mxu0
        %419 = vmatprep.mubr.f32.mxu0 0.0
        %420 = vmatmul.mubr.f32.gmra.mrb[0].mxu0 %v296
        %v421 = vpop.f32.mrb[0].mxu0
        %v422 = vadd.f32 %v281, %v421
        %v423 = vpop.f32.mrb[0].mxu0
        %424 = vmatprep.mubr.f32.mxu0 0.0
        %425 = vmatmul.mubr.f32.gmra.mrb[0].mxu0 %v299
        %v426 = vpop.f32.mrb[0].mxu0
        %v427 = vadd.f32 %v281, %v426
        %v428 = vpop.f32.mrb[0].mxu0
        %429 = vmatprep.mubr.f32.mxu0 0.0
        %430 = vmatmul.mubr.f32.gmra.mrb[0].mxu0 %v302
        %v431 = vpop.f32.mrb[0].mxu0
        %v432 = vadd.f32 %v281, %v431
        %v433 = vpop.f32.mrb[0].mxu0
        %434 = vmatprep.mubr.f32.mxu0 0.0
        %435 = vmatmul.mubr.f32.gmra.mrb[0].mxu0 %v305
        %v436 = vpop.f32.mrb[0].mxu0
        %v437 = vadd.f32 %v281, %v436
        %v438 = vpop.f32.mrb[0].mxu0
        %439 = vmatprep.mubr.f32.mxu0 0.0
        %440 = vmatmul.mubr.f32.gmra.mrb[0].mxu0 %v308
        %v441 = vpop.f32.mrb[0].mxu0
        %v442 = vadd.f32 %v281, %v441
        %v443 = vpop.f32.mrb[0].mxu0
        %444 = vmatprep.mubr.f32.mxu0 0.0
        %445 = vmatmul.mubr.f32.gmra.mrb[0].mxu0 %v311
        %v446 = vpop.f32.mrb[0].mxu0
        %v447 = vadd.f32 %v281, %v446
        %v448 = vpop.f32.mrb[0].mxu0
        %449 = vmatprep.mubr.f32.mxu0 0.0
        %450 = vmatmul.mubr.f32.gmra.mrb[0].mxu0 %v314
        %v451 = vpop.f32.mrb[0].mxu0
        %v452 = vadd.f32 %v281, %v451
        %v453 = vpop.f32.mrb[0].mxu0
        %454 = vmatprep.mubr.f32.mxu0 0.0
        %455 = vmatmul.mubr.f32.gmra.mrb[0].mxu0 %v317
        %v456 = vpop.f32.mrb[0].mxu0
        %v457 = vadd.f32 %v281, %v456
        %v458 = vpop.f32.mrb[0].mxu0
        %459 = vmatprep.mubr.f32.mxu0 0.0
        %460 = vmatmul.mubr.f32.gmra.mrb[0].mxu0 %v320
        %v461 = vpop.f32.mrb[0].mxu0
        %v462 = vadd.f32 %v281, %v461
        %v463 = vpop.f32.mrb[0].mxu0
        %464 = vmatprep.mubr.f32.mxu0 0.0
        %465 = vmatmul.mubr.f32.gmra.mrb[0].mxu0 %v323
        %v466 = vpop.f32.mrb[0].mxu0
        %v467 = vadd.f32 %v281, %v466
        %v468 = vpop.f32.mrb[0].mxu0
        %469 = vmatprep.mubr.f32.mxu0 0.0
        %470 = vmatmul.mubr.f32.gmra.mrb[0].mxu0 %v326
        %v471 = vpop.f32.mrb[0].mxu0
        %v472 = vadd.f32 %v281, %v471
        %v473 = vpop.f32.mrb[0].mxu0
        %474 = vmatprep.mubr.f32.mxu0 0.0
        %475 = vmatmul.mubr.f32.gmra.mrb[0].mxu0 %v329
        %v476 = vpop.f32.mrb[0].mxu0
        %v477 = vadd.f32 %v281, %v476
        %v478 = vpop.f32.mrb[0].mxu0
        %479 = vdwg.mxu0
        %v480 = vmax.f32 %v402, 0.0
        %v481 = vmax.f32 %v407, 0.0
        %v482 = vmax.f32 %v412, 0.0
        %v483 = vmax.f32 %v417, 0.0
        %v484 = vmax.f32 %v422, 0.0
        %v485 = vmax.f32 %v427, 0.0
        %v486 = vmax.f32 %v432, 0.0
        %v487 = vmax.f32 %v437, 0.0
        %v488 = vmax.f32 %v442, 0.0
        %v489 = vmax.f32 %v447, 0.0
        %v490 = vmax.f32 %v452, 0.0
        %v491 = vmax.f32 %v457, 0.0
        %v492 = vmax.f32 %v462, 0.0
        %v493 = vmax.f32 %v467, 0.0
        %v494 = vmax.f32 %v472, 0.0
        %v495 = vmax.f32 %v477, 0.0
        %vm496 = vcmask 64512
        %497 = vst.msk [vmem:[#allocation2] sm:$0xff] %vm496, %v480
        %498 = vst.msk [vmem:[#allocation2 + $0x8] sm:$0xff] %vm496, %v481
        %499 = vst.msk [vmem:[#allocation2 + $0x10] sm:$0xff] %vm496, %v482
        %500 = vst.msk [vmem:[#allocation2 + $0x18] sm:$0xff] %vm496, %v483
        %501 = vst.msk [vmem:[#allocation2 + $0x20] sm:$0xff] %vm496, %v484
        %502 = vst.msk [vmem:[#allocation2 + $0x28] sm:$0xff] %vm496, %v485
        %503 = vst.msk [vmem:[#allocation2 + $0x30] sm:$0xff] %vm496, %v486
        %504 = vst.msk [vmem:[#allocation2 + $0x38] sm:$0xff] %vm496, %v487
        %505 = vst.msk [vmem:[#allocation2 + $0x40] sm:$0xff] %vm496, %v488
        %506 = vst.msk [vmem:[#allocation2 + $0x48] sm:$0xff] %vm496, %v489
        %507 = vst.msk [vmem:[#allocation2 + $0x50] sm:$0xff] %vm496, %v490
        %508 = vst.msk [vmem:[#allocation2 + $0x58] sm:$0xff] %vm496, %v491
        %509 = vst.msk [vmem:[#allocation2 + $0x60] sm:$0xff] %vm496, %v492
        %510 = vst.msk [vmem:[#allocation2 + $0x68] sm:$0xff] %vm496, %v493
        %511 = vst.msk [vmem:[#allocation2 + $0x70] sm:$0xff] %vm496, %v494
        %512 = vst.msk [vmem:[#allocation2 + $0x78] sm:$0xff] %vm496, %v495
        %v513 = vld [vmem:[#allocation2] ss:$2 sm:$0xff]
        %s514 = scalar_lea.vmem [#allocation2], 16
        %v515 = vld [vmem:[%s514] ss:$2 sm:$0xff]
        %s516 = scalar_lea.vmem [#allocation2], 32
        %v517 = vld [vmem:[%s516] ss:$2 sm:$0xff]
        %s518 = scalar_lea.vmem [#allocation2], 48
        %v519 = vld [vmem:[%s518] ss:$2 sm:$0xff]
        %s520 = scalar_lea.vmem [#allocation2], 64
        %v521 = vld [vmem:[%s520] ss:$2 sm:$0xff]
        %s522 = scalar_lea.vmem [#allocation2], 80
        %v523 = vld [vmem:[%s522] ss:$2 sm:$0xff]
        %s524 = scalar_lea.vmem [#allocation2], 96
        %v525 = vld [vmem:[%s524] ss:$2 sm:$0xff]
        %s526 = scalar_lea.vmem [#allocation2], 112
        %v527 = vld [vmem:[%s526] ss:$2 sm:$0xff]
        %s528 = scalar_lea.vmem [#allocation2], 1
        %v529 = vld [vmem:[%s528] ss:$2 sm:$0xff]
        %s530 = scalar_lea.vmem [#allocation2], 17
        %v531 = vld [vmem:[%s530] ss:$2 sm:$0xff]
        %s532 = scalar_lea.vmem [#allocation2], 33
        %v533 = vld [vmem:[%s532] ss:$2 sm:$0xff]
        %s534 = scalar_lea.vmem [#allocation2], 49
        %v535 = vld [vmem:[%s534] ss:$2 sm:$0xff]
        %s536 = scalar_lea.vmem [#allocation2], 65
        %v537 = vld [vmem:[%s536] ss:$2 sm:$0xff]
        %s538 = scalar_lea.vmem [#allocation2], 81
        %v539 = vld [vmem:[%s538] ss:$2 sm:$0xff]
        %s540 = scalar_lea.vmem [#allocation2], 97
        %v541 = vld [vmem:[%s540] ss:$2 sm:$0xff]
        %s542 = scalar_lea.vmem [#allocation2], 113
        %v543 = vld [vmem:[%s542] ss:$2 sm:$0xff]
        %v544 = vmax.f32 %v513, %v529
        %v545 = vmax.f32 %v515, %v531
        %v546 = vmax.f32 %v517, %v533
        %v547 = vmax.f32 %v519, %v535
        %v548 = vmax.f32 %v521, %v537
        %v549 = vmax.f32 %v523, %v539
        %v550 = vmax.f32 %v525, %v541
        %v551 = vmax.f32 %v527, %v543
        %v552 = vld [vmem:[%s4] sm:$0xff]
        %v553 = vld [vmem:[%s4 + $0x8] sm:$0xff]
        %v554 = vld [vmem:[%s4 + $0x10] sm:$0xff]
        %v555 = vld [vmem:[%s4 + $0x18] sm:$0xff]
        %v556 = vld [vmem:[%s4 + $0x20] sm:$0xff]
        %v557 = vld [vmem:[%s4 + $0x28] sm:$0xff]
        %v558 = vld [vmem:[%s4 + $0x30] sm:$0xff]
        %v559 = vld [vmem:[%s4 + $0x38] sm:$0xff]
        %v560 = vrot.slane %v544, 7
        %v561 = vrot.slane %v545, 7
        %v562 = vrot.slane %v546, 7
        %v563 = vrot.slane %v547, 7
        %v564 = vrot.slane %v548, 7
        %v565 = vrot.slane %v549, 7
        %v566 = vrot.slane %v550, 7
        %v567 = vrot.slane %v551, 7
        %v568 = vlaneseq
        %v569 = vshrl.u32 %v568, 7
        %vm570 = vcmp.lt.s32.totalorder %v569, 1
        %v571 = vsel %vm570, %v566, %v567
        %v572 = vsel %vm570, %v565, %v566
        %v573 = vsel %vm570, %v564, %v565
        %v574 = vsel %vm570, %v563, %v564
        %v575 = vsel %vm570, %v562, %v563
        %v576 = vsel %vm570, %v561, %v562
        %v577 = vsel %vm570, %v560, %v561
        %v578 = vsel %vm570, %v567, %v560
        %580 = vset.pattern.permute.xlu0 0
        %581 = vperm.xlu0 %580, %v552
        %v582 = vpop.permute.xlu0 %581
        %585 = vset.pattern.permute.xlu0 0
        %586 = vperm.xlu0 %585, %v553
        %v587 = vpop.permute.xlu0 %586
        %590 = vset.pattern.permute.xlu0 0
        %591 = vperm.xlu0 %590, %v554
        %v592 = vpop.permute.xlu0 %591
        %595 = vset.pattern.permute.xlu0 0
        %596 = vperm.xlu0 %595, %v555
        %v597 = vpop.permute.xlu0 %596
        %600 = vset.pattern.permute.xlu0 0
        %601 = vperm.xlu0 %600, %v556
        %v602 = vpop.permute.xlu0 %601
        %605 = vset.pattern.permute.xlu0 0
        %606 = vperm.xlu0 %605, %v557
        %v607 = vpop.permute.xlu0 %606
        %610 = vset.pattern.permute.xlu0 0
        %611 = vperm.xlu0 %610, %v558
        %v612 = vpop.permute.xlu0 %611
        %615 = vset.pattern.permute.xlu0 0
        %616 = vperm.xlu0 %615, %v559
        %v617 = vpop.permute.xlu0 %616
        %v619 = vmul.f32 %v578, %v582
        %v620 = vmul.f32 %v577, %v587
        %v621 = vmul.f32 %v576, %v592
        %v622 = vmul.f32 %v575, %v597
        %v623 = vmul.f32 %v574, %v602
        %v624 = vmul.f32 %v573, %v607
        %v625 = vmul.f32 %v572, %v612
        %v626 = vmul.f32 %v571, %v617
        %v627 = vrot.slane %v544, 1
        %v628 = vrot.slane %v545, 1
        %v629 = vrot.slane %v546, 1
        %v630 = vrot.slane %v547, 1
        %v631 = vrot.slane %v548, 1
        %v632 = vrot.slane %v549, 1
        %v633 = vrot.slane %v550, 1
        %v634 = vrot.slane %v551, 1
        %vm635 = vcmp.lt.s32.totalorder %v569, 7
        %v636 = vsel %vm635, %v633, %v634
        %v637 = vsel %vm635, %v632, %v633
        %v638 = vsel %vm635, %v631, %v632
        %v639 = vsel %vm635, %v630, %v631
        %v640 = vsel %vm635, %v629, %v630
        %v641 = vsel %vm635, %v628, %v629
        %v642 = vsel %vm635, %v627, %v628
        %v643 = vsel %vm635, %v634, %v627
        %644 = vset.pattern.permute.xlu0 1
        %645 = vperm.xlu0 %644, %v552
        %v646 = vpop.permute.xlu0 %645
        %648 = vset.pattern.permute.xlu0 1
        %649 = vperm.xlu0 %648, %v553
        %v650 = vpop.permute.xlu0 %649
        %652 = vset.pattern.permute.xlu0 1
        %653 = vperm.xlu0 %652, %v554
        %v654 = vpop.permute.xlu0 %653
        %656 = vset.pattern.permute.xlu0 1
        %657 = vperm.xlu0 %656, %v555
        %v658 = vpop.permute.xlu0 %657
        %660 = vset.pattern.permute.xlu0 1
        %661 = vperm.xlu0 %660, %v556
        %v662 = vpop.permute.xlu0 %661
        %664 = vset.pattern.permute.xlu0 1
        %665 = vperm.xlu0 %664, %v557
        %v666 = vpop.permute.xlu0 %665
        %668 = vset.pattern.permute.xlu0 1
        %669 = vperm.xlu0 %668, %v558
        %v670 = vpop.permute.xlu0 %669
        %672 = vset.pattern.permute.xlu0 1
        %673 = vperm.xlu0 %672, %v559
        %v674 = vpop.permute.xlu0 %673
        %v676 = vmul.f32 %v642, %v646
        %v677 = vmul.f32 %v641, %v650
        %v678 = vmul.f32 %v640, %v654
        %v679 = vmul.f32 %v639, %v658
        %v680 = vmul.f32 %v638, %v662
        %v681 = vmul.f32 %v637, %v666
        %v682 = vmul.f32 %v636, %v670
        %v683 = vmul.f32 %v643, %v674
        %v684 = vld [vmem:[%s3 + $0x18] sm:$0xff]
        %v685 = vld [vmem:[%s3 + $0x20] sm:$0xff]
        %v687 = vsel %vm496, %v544, 0
        %v690 = vsel %vm496, %v545, 0
        %v693 = vsel %vm496, %v546, 0
        %v696 = vsel %vm496, %v547, 0
        %v699 = vsel %vm496, %v548, 0
        %v702 = vsel %vm496, %v549, 0
        %v705 = vsel %vm496, %v550, 0
        %v708 = vsel %vm496, %v551, 0
        %710 = vmatprep.subr.mxu0 0.0
        %711 = vmatpush1.msra.mxu0 %v685
        %712 = vmatprep.subr.mxu0 0.0
        %713 = vmatpush1.msra.mxu0 0.0
        %714 = vmatprep.subr.mxu0 0.0
        %715 = vmatpush1.msra.mxu0 0.0
        %716 = vmatprep.subr.mxu0 0.0
        %717 = vmatpush1.msra.mxu0 0.0
        %718 = vmatprep.subr.mxu0 0.0
        %719 = vmatpush1.msra.mxu0 0.0
        %720 = vmatprep.subr.mxu0 0.0
        %721 = vmatpush1.msra.mxu0 0.0
        %722 = vmatprep.subr.mxu0 0.0
        %723 = vmatpush1.msra.mxu0 0.0
        %724 = vmatprep.subr.mxu0 0.0
        %725 = vmatpush1.msra.mxu0 0.0
        %726 = vmatprep.subr.mxu0 0.0
        %727 = vmatpush1.msra.mxu0 0.0
        %728 = vmatprep.subr.mxu0 0.0
        %729 = vmatpush1.msra.mxu0 0.0
        %730 = vmatprep.subr.mxu0 0.0
        %731 = vmatpush1.msra.mxu0 0.0
        %732 = vmatprep.subr.mxu0 0.0
        %733 = vmatpush1.msra.mxu0 0.0
        %734 = vmatprep.subr.mxu0 0.0
        %735 = vmatpush1.msra.mxu0 0.0
        %736 = vmatprep.subr.mxu0 0.0
        %737 = vmatpush1.msra.mxu0 0.0
        %738 = vmatprep.subr.mxu0 0.0
        %739 = vmatpush1.msra.mxu0 0.0
        %740 = vmatprep.subr.mxu0 0.0
        %741 = vmatpush1.msra.mxu0 0.0
        %742 = vmatprep.subr.mxu0 0.0
        %743 = vmatpush1.msra.mxu0 0.0
        %744 = vmatprep.subr.mxu0 0.0
        %745 = vmatpush1.msra.mxu0 0.0
        %746 = vmatprep.subr.mxu0 0.0
        %747 = vmatpush1.msra.mxu0 0.0
        %748 = vmatprep.subr.mxu0 0.0
        %749 = vmatpush1.msra.mxu0 0.0
        %750 = vmatprep.subr.mxu0 0.0
        %751 = vmatpush1.msra.mxu0 0.0
        %752 = vmatprep.subr.mxu0 0.0
        %753 = vmatpush1.msra.mxu0 0.0
        %754 = vmatprep.subr.mxu0 0.0
        %755 = vmatpush1.msra.mxu0 0.0
        %756 = vmatprep.subr.mxu0 0.0
        %757 = vmatpush1.msra.mxu0 0.0
        %758 = vmatprep.subr.mxu0 0.0
        %759 = vmatpush1.msra.mxu0 0.0
        %760 = vmatprep.subr.mxu0 0.0
        %761 = vmatpush1.msra.mxu0 0.0
        %762 = vmatprep.subr.mxu0 0.0
        %763 = vmatpush1.msra.mxu0 0.0
        %764 = vmatprep.subr.mxu0 0.0
        %765 = vmatpush1.msra.mxu0 0.0
        %766 = vmatprep.subr.mxu0 0.0
        %767 = vmatpush1.msra.mxu0 0.0
        %768 = vmatprep.subr.mxu0 0.0
        %769 = vmatpush1.msra.mxu0 0.0
        %770 = vmatprep.subr.mxu0 0.0
        %771 = vmatpush1.msra.mxu0 0.0
        %772 = vmatprep.subr.mxu0 0.0
        %773 = vmatpush1.msra.mxu0 0.0
        %774 = vmatprep.mubr.f32.mxu0 0.0
        %775 = vmatmul.mubr.f32.gmra.mrb[0].mxu0 %v687
        %v776 = vpop.f32.mrb[0].mxu0
        %v777 = vadd.f32 0.0, %v776
        %v778 = vpop.f32.mrb[0].mxu0
        %779 = vmatprep.mubr.f32.mxu0 0.0
        %780 = vmatmul.mubr.f32.gmra.mrb[0].mxu0 %v690
        %v781 = vpop.f32.mrb[0].mxu0
        %v782 = vadd.f32 0.0, %v781
        %v783 = vpop.f32.mrb[0].mxu0
        %784 = vmatprep.mubr.f32.mxu0 0.0
        %785 = vmatmul.mubr.f32.gmra.mrb[0].mxu0 %v693
        %v786 = vpop.f32.mrb[0].mxu0
        %v787 = vadd.f32 0.0, %v786
        %v788 = vpop.f32.mrb[0].mxu0
        %789 = vmatprep.mubr.f32.mxu0 0.0
        %790 = vmatmul.mubr.f32.gmra.mrb[0].mxu0 %v696
        %v791 = vpop.f32.mrb[0].mxu0
        %v792 = vadd.f32 0.0, %v791
        %v793 = vpop.f32.mrb[0].mxu0
        %794 = vmatprep.mubr.f32.mxu0 0.0
        %795 = vmatmul.mubr.f32.gmra.mrb[0].mxu0 %v699
        %v796 = vpop.f32.mrb[0].mxu0
        %v797 = vadd.f32 0.0, %v796
        %v798 = vpop.f32.mrb[0].mxu0
        %799 = vmatprep.mubr.f32.mxu0 0.0
        %800 = vmatmul.mubr.f32.gmra.mrb[0].mxu0 %v702
        %v801 = vpop.f32.mrb[0].mxu0
        %v802 = vadd.f32 0.0, %v801
        %v803 = vpop.f32.mrb[0].mxu0
        %804 = vmatprep.mubr.f32.mxu0 0.0
        %805 = vmatmul.mubr.f32.gmra.mrb[0].mxu0 %v705
        %v806 = vpop.f32.mrb[0].mxu0
        %v807 = vadd.f32 0.0, %v806
        %v808 = vpop.f32.mrb[0].mxu0
        %809 = vmatprep.mubr.f32.mxu0 0.0
        %810 = vmatmul.mubr.f32.gmra.mrb[0].mxu0 %v708
        %v811 = vpop.f32.mrb[0].mxu0
        %v812 = vadd.f32 0.0, %v811
        %v813 = vpop.f32.mrb[0].mxu0
        %814 = vdwg.mxu0
        %v816 = vsel %vm496, %v619, 0
        %v819 = vsel %vm496, %v620, 0
        %v822 = vsel %vm496, %v621, 0
        %v825 = vsel %vm496, %v622, 0
        %v828 = vsel %vm496, %v623, 0
        %v831 = vsel %vm496, %v624, 0
        %v834 = vsel %vm496, %v625, 0
        %v837 = vsel %vm496, %v626, 0
        %839 = vmatprep.subr.mxu0 0.0
        %840 = vmatpush1.msra.mxu0 %v684
        %841 = vmatprep.subr.mxu0 0.0
        %842 = vmatpush1.msra.mxu0 0.0
        %843 = vmatprep.subr.mxu0 0.0
        %844 = vmatpush1.msra.mxu0 0.0
        %845 = vmatprep.subr.mxu0 0.0
        %846 = vmatpush1.msra.mxu0 0.0
        %847 = vmatprep.subr.mxu0 0.0
        %848 = vmatpush1.msra.mxu0 0.0
        %849 = vmatprep.subr.mxu0 0.0
        %850 = vmatpush1.msra.mxu0 0.0
        %851 = vmatprep.subr.mxu0 0.0
        %852 = vmatpush1.msra.mxu0 0.0
        %853 = vmatprep.subr.mxu0 0.0
        %854 = vmatpush1.msra.mxu0 0.0
        %855 = vmatprep.subr.mxu0 0.0
        %856 = vmatpush1.msra.mxu0 0.0
        %857 = vmatprep.subr.mxu0 0.0
        %858 = vmatpush1.msra.mxu0 0.0
        %859 = vmatprep.subr.mxu0 0.0
        %860 = vmatpush1.msra.mxu0 0.0
        %861 = vmatprep.subr.mxu0 0.0
        %862 = vmatpush1.msra.mxu0 0.0
        %863 = vmatprep.subr.mxu0 0.0
        %864 = vmatpush1.msra.mxu0 0.0
        %865 = vmatprep.subr.mxu0 0.0
        %866 = vmatpush1.msra.mxu0 0.0
        %867 = vmatprep.subr.mxu0 0.0
        %868 = vmatpush1.msra.mxu0 0.0
        %869 = vmatprep.subr.mxu0 0.0
        %870 = vmatpush1.msra.mxu0 0.0
        %871 = vmatprep.subr.mxu0 0.0
        %872 = vmatpush1.msra.mxu0 0.0
        %873 = vmatprep.subr.mxu0 0.0
        %874 = vmatpush1.msra.mxu0 0.0
        %875 = vmatprep.subr.mxu0 0.0
        %876 = vmatpush1.msra.mxu0 0.0
        %877 = vmatprep.subr.mxu0 0.0
        %878 = vmatpush1.msra.mxu0 0.0
        %879 = vmatprep.subr.mxu0 0.0
        %880 = vmatpush1.msra.mxu0 0.0
        %881 = vmatprep.subr.mxu0 0.0
        %882 = vmatpush1.msra.mxu0 0.0
        %883 = vmatprep.subr.mxu0 0.0
        %884 = vmatpush1.msra.mxu0 0.0
        %885 = vmatprep.subr.mxu0 0.0
        %886 = vmatpush1.msra.mxu0 0.0
        %887 = vmatprep.subr.mxu0 0.0
        %888 = vmatpush1.msra.mxu0 0.0
        %889 = vmatprep.subr.mxu0 0.0
        %890 = vmatpush1.msra.mxu0 0.0
        %891 = vmatprep.subr.mxu0 0.0
        %892 = vmatpush1.msra.mxu0 0.0
        %893 = vmatprep.subr.mxu0 0.0
        %894 = vmatpush1.msra.mxu0 0.0
        %895 = vmatprep.subr.mxu0 0.0
        %896 = vmatpush1.msra.mxu0 0.0
        %897 = vmatprep.subr.mxu0 0.0
        %898 = vmatpush1.msra.mxu0 0.0
        %899 = vmatprep.subr.mxu0 0.0
        %900 = vmatpush1.msra.mxu0 0.0
        %901 = vmatprep.subr.mxu0 0.0
        %902 = vmatpush1.msra.mxu0 0.0
        %903 = vmatprep.mubr.f32.mxu0 0.0
        %904 = vmatmul.mubr.f32.gmra.mrb[0].mxu0 %v816
        %v905 = vpop.f32.mrb[0].mxu0
        %v906 = vadd.f32 %v777, %v905
        %v907 = vpop.f32.mrb[0].mxu0
        %908 = vmatprep.mubr.f32.mxu0 0.0
        %909 = vmatmul.mubr.f32.gmra.mrb[0].mxu0 %v819
        %v910 = vpop.f32.mrb[0].mxu0
        %v911 = vadd.f32 %v782, %v910
        %v912 = vpop.f32.mrb[0].mxu0
        %913 = vmatprep.mubr.f32.mxu0 0.0
        %914 = vmatmul.mubr.f32.gmra.mrb[0].mxu0 %v822
        %v915 = vpop.f32.mrb[0].mxu0
        %v916 = vadd.f32 %v787, %v915
        %v917 = vpop.f32.mrb[0].mxu0
        %918 = vmatprep.mubr.f32.mxu0 0.0
        %919 = vmatmul.mubr.f32.gmra.mrb[0].mxu0 %v825
        %v920 = vpop.f32.mrb[0].mxu0
        %v921 = vadd.f32 %v792, %v920
        %v922 = vpop.f32.mrb[0].mxu0
        %923 = vmatprep.mubr.f32.mxu0 0.0
        %924 = vmatmul.mubr.f32.gmra.mrb[0].mxu0 %v828
        %v925 = vpop.f32.mrb[0].mxu0
        %v926 = vadd.f32 %v797, %v925
        %v927 = vpop.f32.mrb[0].mxu0
        %928 = vmatprep.mubr.f32.mxu0 0.0
        %929 = vmatmul.mubr.f32.gmra.mrb[0].mxu0 %v831
        %v930 = vpop.f32.mrb[0].mxu0
        %v931 = vadd.f32 %v802, %v930
        %v932 = vpop.f32.mrb[0].mxu0
        %933 = vmatprep.mubr.f32.mxu0 0.0
        %934 = vmatmul.mubr.f32.gmra.mrb[0].mxu0 %v834
        %v935 = vpop.f32.mrb[0].mxu0
        %v936 = vadd.f32 %v807, %v935
        %v937 = vpop.f32.mrb[0].mxu0
        %938 = vmatprep.mubr.f32.mxu0 0.0
        %939 = vmatmul.mubr.f32.gmra.mrb[0].mxu0 %v837
        %v940 = vpop.f32.mrb[0].mxu0
        %v941 = vadd.f32 %v812, %v940
        %v942 = vpop.f32.mrb[0].mxu0
        %943 = vdwg.mxu0
        %v944 = vld [vmem:[%s3 + $0x28] sm:$0xff]
        %v946 = vsel %vm496, %v676, 0
        %v949 = vsel %vm496, %v677, 0
        %v952 = vsel %vm496, %v678, 0
        %v955 = vsel %vm496, %v679, 0
        %v958 = vsel %vm496, %v680, 0
        %v961 = vsel %vm496, %v681, 0
        %v964 = vsel %vm496, %v682, 0
        %v967 = vsel %vm496, %v683, 0
        %969 = vmatprep.subr.mxu0 0.0
        %970 = vmatpush1.msra.mxu0 %v944
        %971 = vmatprep.subr.mxu0 0.0
        %972 = vmatpush1.msra.mxu0 0.0
        %973 = vmatprep.subr.mxu0 0.0
        %974 = vmatpush1.msra.mxu0 0.0
        %975 = vmatprep.subr.mxu0 0.0
        %976 = vmatpush1.msra.mxu0 0.0
        %977 = vmatprep.subr.mxu0 0.0
        %978 = vmatpush1.msra.mxu0 0.0
        %979 = vmatprep.subr.mxu0 0.0
        %980 = vmatpush1.msra.mxu0 0.0
        %981 = vmatprep.subr.mxu0 0.0
        %982 = vmatpush1.msra.mxu0 0.0
        %983 = vmatprep.subr.mxu0 0.0
        %984 = vmatpush1.msra.mxu0 0.0
        %985 = vmatprep.subr.mxu0 0.0
        %986 = vmatpush1.msra.mxu0 0.0
        %987 = vmatprep.subr.mxu0 0.0
        %988 = vmatpush1.msra.mxu0 0.0
        %989 = vmatprep.subr.mxu0 0.0
        %990 = vmatpush1.msra.mxu0 0.0
        %991 = vmatprep.subr.mxu0 0.0
        %992 = vmatpush1.msra.mxu0 0.0
        %993 = vmatprep.subr.mxu0 0.0
        %994 = vmatpush1.msra.mxu0 0.0
        %995 = vmatprep.subr.mxu0 0.0
        %996 = vmatpush1.msra.mxu0 0.0
        %997 = vmatprep.subr.mxu0 0.0
        %998 = vmatpush1.msra.mxu0 0.0
        %999 = vmatprep.subr.mxu0 0.0
        %1000 = vmatpush1.msra.mxu0 0.0
        %1001 = vmatprep.subr.mxu0 0.0
        %1002 = vmatpush1.msra.mxu0 0.0
        %1003 = vmatprep.subr.mxu0 0.0
        %1004 = vmatpush1.msra.mxu0 0.0
        %1005 = vmatprep.subr.mxu0 0.0
        %1006 = vmatpush1.msra.mxu0 0.0
        %1007 = vmatprep.subr.mxu0 0.0
        %1008 = vmatpush1.msra.mxu0 0.0
        %1009 = vmatprep.subr.mxu0 0.0
        %1010 = vmatpush1.msra.mxu0 0.0
        %1011 = vmatprep.subr.mxu0 0.0
        %1012 = vmatpush1.msra.mxu0 0.0
        %1013 = vmatprep.subr.mxu0 0.0
        %1014 = vmatpush1.msra.mxu0 0.0
        %1015 = vmatprep.subr.mxu0 0.0
        %1016 = vmatpush1.msra.mxu0 0.0
        %1017 = vmatprep.subr.mxu0 0.0
        %1018 = vmatpush1.msra.mxu0 0.0
        %1019 = vmatprep.subr.mxu0 0.0
        %1020 = vmatpush1.msra.mxu0 0.0
        %1021 = vmatprep.subr.mxu0 0.0
        %1022 = vmatpush1.msra.mxu0 0.0
        %1023 = vmatprep.subr.mxu0 0.0
        %1024 = vmatpush1.msra.mxu0 0.0
        %1025 = vmatprep.subr.mxu0 0.0
        %1026 = vmatpush1.msra.mxu0 0.0
        %1027 = vmatprep.subr.mxu0 0.0
        %1028 = vmatpush1.msra.mxu0 0.0
        %1029 = vmatprep.subr.mxu0 0.0
        %1030 = vmatpush1.msra.mxu0 0.0
        %1031 = vmatprep.subr.mxu0 0.0
        %1032 = vmatpush1.msra.mxu0 0.0
        %1033 = vmatprep.mubr.f32.mxu0 0.0
        %1034 = vmatmul.mubr.f32.gmra.mrb[0].mxu0 %v946
        %v1035 = vpop.f32.mrb[0].mxu0
        %v1036 = vadd.f32 0.0, %v1035
        %v1037 = vpop.f32.mrb[0].mxu0
        %1038 = vmatprep.mubr.f32.mxu0 0.0
        %1039 = vmatmul.mubr.f32.gmra.mrb[0].mxu0 %v949
        %v1040 = vpop.f32.mrb[0].mxu0
        %v1041 = vadd.f32 0.0, %v1040
        %v1042 = vpop.f32.mrb[0].mxu0
        %1043 = vmatprep.mubr.f32.mxu0 0.0
        %1044 = vmatmul.mubr.f32.gmra.mrb[0].mxu0 %v952
        %v1045 = vpop.f32.mrb[0].mxu0
        %v1046 = vadd.f32 0.0, %v1045
        %v1047 = vpop.f32.mrb[0].mxu0
        %1048 = vmatprep.mubr.f32.mxu0 0.0
        %1049 = vmatmul.mubr.f32.gmra.mrb[0].mxu0 %v955
        %v1050 = vpop.f32.mrb[0].mxu0
        %v1051 = vadd.f32 0.0, %v1050
        %v1052 = vpop.f32.mrb[0].mxu0
        %1053 = vmatprep.mubr.f32.mxu0 0.0
        %1054 = vmatmul.mubr.f32.gmra.mrb[0].mxu0 %v958
        %v1055 = vpop.f32.mrb[0].mxu0
        %v1056 = vadd.f32 0.0, %v1055
        %v1057 = vpop.f32.mrb[0].mxu0
        %1058 = vmatprep.mubr.f32.mxu0 0.0
        %1059 = vmatmul.mubr.f32.gmra.mrb[0].mxu0 %v961
        %v1060 = vpop.f32.mrb[0].mxu0
        %v1061 = vadd.f32 0.0, %v1060
        %v1062 = vpop.f32.mrb[0].mxu0
        %1063 = vmatprep.mubr.f32.mxu0 0.0
        %1064 = vmatmul.mubr.f32.gmra.mrb[0].mxu0 %v964
        %v1065 = vpop.f32.mrb[0].mxu0
        %v1066 = vadd.f32 0.0, %v1065
        %v1067 = vpop.f32.mrb[0].mxu0
        %1068 = vmatprep.mubr.f32.mxu0 0.0
        %1069 = vmatmul.mubr.f32.gmra.mrb[0].mxu0 %v967
        %v1070 = vpop.f32.mrb[0].mxu0
        %v1071 = vadd.f32 0.0, %v1070
        %v1072 = vpop.f32.mrb[0].mxu0
        %1073 = vdwg.mxu0
        %v1074 = vadd.f32 %v906, %v1036
        %v1075 = vadd.f32 %v911, %v1041
        %v1076 = vadd.f32 %v916, %v1046
        %v1077 = vadd.f32 %v921, %v1051
        %v1078 = vadd.f32 %v926, %v1056
        %v1079 = vadd.f32 %v931, %v1061
        %v1080 = vadd.f32 %v936, %v1066
        %v1081 = vadd.f32 %v941, %v1071
        %v1082 = vld [vmem:[%s3 + $0x30] sm:$0x1]
        %v1083 = vlaneseq
        %v1084 = vshrl.u32 %v1083, 7
        %v1085 = vsub.s32 0, %v1084
        %v1086 = vrot.slane %v1082, %v1085
        %v1087 = vadd.f32 %v1074, %v1086
        %v1088 = vadd.f32 %v1075, %v1086
        %v1089 = vadd.f32 %v1076, %v1086
        %v1090 = vadd.f32 %v1077, %v1086
        %v1091 = vadd.f32 %v1078, %v1086
        %v1092 = vadd.f32 %v1079, %v1086
        %v1093 = vadd.f32 %v1080, %v1086
        %v1094 = vadd.f32 %v1081, %v1086
        %v1095 = vmax.f32 %v1087, 0.0
        %v1096 = vmax.f32 %v1088, 0.0
        %v1097 = vmax.f32 %v1089, 0.0
        %v1098 = vmax.f32 %v1090, 0.0
        %v1099 = vmax.f32 %v1091, 0.0
        %v1100 = vmax.f32 %v1092, 0.0
        %v1101 = vmax.f32 %v1093, 0.0
        %v1102 = vmax.f32 %v1094, 0.0
        %vm1103 = vcmask 130048
        %1104 = vst.msk [vmem:[#allocation3] sm:$0xff] %vm1103, %v1095
        %1105 = vst.msk [vmem:[#allocation3 + $0x8] sm:$0xff] %vm1103, %v1096
        %1106 = vst.msk [vmem:[#allocation3 + $0x10] sm:$0xff] %vm1103, %v1097
        %1107 = vst.msk [vmem:[#allocation3 + $0x18] sm:$0xff] %vm1103, %v1098
        %1108 = vst.msk [vmem:[#allocation3 + $0x20] sm:$0xff] %vm1103, %v1099
        %1109 = vst.msk [vmem:[#allocation3 + $0x28] sm:$0xff] %vm1103, %v1100
        %1110 = vst.msk [vmem:[#allocation3 + $0x30] sm:$0xff] %vm1103, %v1101
        %1111 = vst.msk [vmem:[#allocation3 + $0x38] sm:$0xff] %vm1103, %v1102
        %v1112 = vld [vmem:[#allocation3] sm:$0xff]
        %v1113 = vsel %vm1103, %v1112, -inf
        %v1114 = vrot.slane %v1113, 4
        %v1115 = vmax.f32 %v1113, %v1114
        %v1116 = vrot.slane %v1115, 2
        %v1117 = vmax.f32 %v1115, %v1116
        %v1118 = vrot.slane %v1117, 1
        %v1119 = vmax.f32 %v1117, %v1118
        %vm1120 = vcmask 122880
        %1121 = vst.msk [vmem:[#allocation4] sm:$0x1] %vm1120, %v1119
        %v1122 = vld [vmem:[#allocation3 + $0x8] sm:$0xff]
        %v1123 = vsel %vm1103, %v1122, -inf
        %v1124 = vrot.slane %v1123, 4
        %v1125 = vmax.f32 %v1123, %v1124
        %v1126 = vrot.slane %v1125, 2
        %v1127 = vmax.f32 %v1125, %v1126
        %v1128 = vrot.slane %v1127, 1
        %v1129 = vmax.f32 %v1127, %v1128
        %1130 = vst.msk [vmem:[#allocation4 + $0x1] sm:$0x1] %vm1120, %v1129
        %v1131 = vld [vmem:[#allocation3 + $0x10] sm:$0xff]
        %v1132 = vsel %vm1103, %v1131, -inf
        %v1133 = vrot.slane %v1132, 4
        %v1134 = vmax.f32 %v1132, %v1133
        %v1135 = vrot.slane %v1134, 2
        %v1136 = vmax.f32 %v1134, %v1135
        %v1137 = vrot.slane %v1136, 1
        %v1138 = vmax.f32 %v1136, %v1137
        %1139 = vst.msk [vmem:[#allocation4 + $0x2] sm:$0x1] %vm1120, %v1138
        %v1140 = vld [vmem:[#allocation3 + $0x18] sm:$0xff]
        %v1141 = vsel %vm1103, %v1140, -inf
        %v1142 = vrot.slane %v1141, 4
        %v1143 = vmax.f32 %v1141, %v1142
        %v1144 = vrot.slane %v1143, 2
        %v1145 = vmax.f32 %v1143, %v1144
        %v1146 = vrot.slane %v1145, 1
        %v1147 = vmax.f32 %v1145, %v1146
        %1148 = vst.msk [vmem:[#allocation4 + $0x3] sm:$0x1] %vm1120, %v1147
        %v1149 = vld [vmem:[#allocation3 + $0x20] sm:$0xff]
        %v1150 = vsel %vm1103, %v1149, -inf
        %v1151 = vrot.slane %v1150, 4
        %v1152 = vmax.f32 %v1150, %v1151
        %v1153 = vrot.slane %v1152, 2
        %v1154 = vmax.f32 %v1152, %v1153
        %v1155 = vrot.slane %v1154, 1
        %v1156 = vmax.f32 %v1154, %v1155
        %1157 = vst.msk [vmem:[#allocation4 + $0x4] sm:$0x1] %vm1120, %v1156
        %v1158 = vld [vmem:[#allocation3 + $0x28] sm:$0xff]
        %v1159 = vsel %vm1103, %v1158, -inf
        %v1160 = vrot.slane %v1159, 4
        %v1161 = vmax.f32 %v1159, %v1160
        %v1162 = vrot.slane %v1161, 2
        %v1163 = vmax.f32 %v1161, %v1162
        %v1164 = vrot.slane %v1163, 1
        %v1165 = vmax.f32 %v1163, %v1164
        %1166 = vst.msk [vmem:[#allocation4 + $0x5] sm:$0x1] %vm1120, %v1165
        %v1167 = vld [vmem:[#allocation3 + $0x30] sm:$0xff]
        %v1168 = vsel %vm1103, %v1167, -inf
        %v1169 = vrot.slane %v1168, 4
        %v1170 = vmax.f32 %v1168, %v1169
        %v1171 = vrot.slane %v1170, 2
        %v1172 = vmax.f32 %v1170, %v1171
        %v1173 = vrot.slane %v1172, 1
        %v1174 = vmax.f32 %v1172, %v1173
        %1175 = vst.msk [vmem:[#allocation4 + $0x6] sm:$0x1] %vm1120, %v1174
        %v1176 = vld [vmem:[#allocation3 + $0x38] sm:$0xff]
        %v1177 = vsel %vm1103, %v1176, -inf
        %v1178 = vrot.slane %v1177, 4
        %v1179 = vmax.f32 %v1177, %v1178
        %v1180 = vrot.slane %v1179, 2
        %v1181 = vmax.f32 %v1179, %v1180
        %v1182 = vrot.slane %v1181, 1
        %v1183 = vmax.f32 %v1181, %v1182
        %1184 = vst.msk [vmem:[#allocation4 + $0x7] sm:$0x1] %vm1120, %v1183
        %v1185 = vld [vmem:[#allocation4] sm:$0xff]
        %v1186 = vld [vmem:[%s254] sm:$0xff]
        %v1187 = vld [vmem:[%s3 + $0x38] sm:$0x3f]
        %v1188 = vld [vmem:[%s3 + $0x40] sm:$0x1]
        %v1189 = vlaneseq
        %v1190 = vshrl.u32 %v1189, 7
        %v1191 = vsub.s32 0, %v1190
        %v1192 = vrot.slane %v1188, %v1191
        %vm1193 = vcmask 48128
        %v1195 = vsel %vm1193, %v1186, 0
        %vm1197 = vcmask 1045504
        %v1199 = vsel %vm1197, %v1187, 0
        %1201 = vmatprep.subr.mxu0 0.0
        %1202 = vmatpush1.msra.mxu0 %v1199
        %1203 = vmatprep.subr.mxu0 0.0
        %1204 = vmatpush1.msra.mxu0 0.0
        %1205 = vmatprep.subr.mxu0 0.0
        %1206 = vmatpush1.msra.mxu0 0.0
        %1207 = vmatprep.subr.mxu0 0.0
        %1208 = vmatpush1.msra.mxu0 0.0
        %1209 = vmatprep.subr.mxu0 0.0
        %1210 = vmatpush1.msra.mxu0 0.0
        %1211 = vmatprep.subr.mxu0 0.0
        %1212 = vmatpush1.msra.mxu0 0.0
        %1213 = vmatprep.subr.mxu0 0.0
        %1214 = vmatpush1.msra.mxu0 0.0
        %1215 = vmatprep.subr.mxu0 0.0
        %1216 = vmatpush1.msra.mxu0 0.0
        %1217 = vmatprep.subr.mxu0 0.0
        %1218 = vmatpush1.msra.mxu0 0.0
        %1219 = vmatprep.subr.mxu0 0.0
        %1220 = vmatpush1.msra.mxu0 0.0
        %1221 = vmatprep.subr.mxu0 0.0
        %1222 = vmatpush1.msra.mxu0 0.0
        %1223 = vmatprep.subr.mxu0 0.0
        %1224 = vmatpush1.msra.mxu0 0.0
        %1225 = vmatprep.subr.mxu0 0.0
        %1226 = vmatpush1.msra.mxu0 0.0
        %1227 = vmatprep.subr.mxu0 0.0
        %1228 = vmatpush1.msra.mxu0 0.0
        %1229 = vmatprep.subr.mxu0 0.0
        %1230 = vmatpush1.msra.mxu0 0.0
        %1231 = vmatprep.subr.mxu0 0.0
        %1232 = vmatpush1.msra.mxu0 0.0
        %1233 = vmatprep.subr.mxu0 0.0
        %1234 = vmatpush1.msra.mxu0 0.0
        %1235 = vmatprep.subr.mxu0 0.0
        %1236 = vmatpush1.msra.mxu0 0.0
        %1237 = vmatprep.subr.mxu0 0.0
        %1238 = vmatpush1.msra.mxu0 0.0
        %1239 = vmatprep.subr.mxu0 0.0
        %1240 = vmatpush1.msra.mxu0 0.0
        %1241 = vmatprep.subr.mxu0 0.0
        %1242 = vmatpush1.msra.mxu0 0.0
        %1243 = vmatprep.subr.mxu0 0.0
        %1244 = vmatpush1.msra.mxu0 0.0
        %1245 = vmatprep.subr.mxu0 0.0
        %1246 = vmatpush1.msra.mxu0 0.0
        %1247 = vmatprep.subr.mxu0 0.0
        %1248 = vmatpush1.msra.mxu0 0.0
        %1249 = vmatprep.subr.mxu0 0.0
        %1250 = vmatpush1.msra.mxu0 0.0
        %1251 = vmatprep.subr.mxu0 0.0
        %1252 = vmatpush1.msra.mxu0 0.0
        %1253 = vmatprep.subr.mxu0 0.0
        %1254 = vmatpush1.msra.mxu0 0.0
        %1255 = vmatprep.subr.mxu0 0.0
        %1256 = vmatpush1.msra.mxu0 0.0
        %1257 = vmatprep.subr.mxu0 0.0
        %1258 = vmatpush1.msra.mxu0 0.0
        %1259 = vmatprep.subr.mxu0 0.0
        %1260 = vmatpush1.msra.mxu0 0.0
        %1261 = vmatprep.subr.mxu0 0.0
        %1262 = vmatpush1.msra.mxu0 0.0
        %1263 = vmatprep.subr.mxu0 0.0
        %1264 = vmatpush1.msra.mxu0 0.0
        %1265 = vmatprep.mubr.f32.mxu0 0.0
        %1266 = vmatmul.mubr.f32.gmra.mrb[0].mxu0 %v1195
        %v1267 = vpop.f32.mrb[0].mxu0
        %v1268 = vadd.f32 %v1192, %v1267
        %v1269 = vpop.f32.mrb[0].mxu0
        %1270 = vdwg.mxu0
        %v1271 = vmax.f32 %v1268, 0.0
        %v1272 = vld [vmem:[%s3 + $0x48] sm:$0xff]
        %v1273 = vld [vmem:[%s3 + $0x50] sm:$0xff]
        %v1274 = vld [vmem:[%s3 + $0x58] sm:$0xff]
        %v1275 = vld [vmem:[%s3 + $0x60] sm:$0xff]
        %v1277 = vsel %vm1103, %v1271, 0
        %1279 = vmatprep.subr.mxu0 0.0
        %1280 = vmatpush1.msra.mxu0 %v1274
        %1281 = vmatprep.subr.mxu0 0.0
        %1282 = vmatpush1.msra.mxu0 %v1275
        %1283 = vmatprep.subr.mxu0 0.0
        %1284 = vmatpush1.msra.mxu0 0.0
        %1285 = vmatprep.subr.mxu0 0.0
        %1286 = vmatpush1.msra.mxu0 0.0
        %1287 = vmatprep.subr.mxu0 0.0
        %1288 = vmatpush1.msra.mxu0 0.0
        %1289 = vmatprep.subr.mxu0 0.0
        %1290 = vmatpush1.msra.mxu0 0.0
        %1291 = vmatprep.subr.mxu0 0.0
        %1292 = vmatpush1.msra.mxu0 0.0
        %1293 = vmatprep.subr.mxu0 0.0
        %1294 = vmatpush1.msra.mxu0 0.0
        %1295 = vmatprep.subr.mxu0 0.0
        %1296 = vmatpush1.msra.mxu0 0.0
        %1297 = vmatprep.subr.mxu0 0.0
        %1298 = vmatpush1.msra.mxu0 0.0
        %1299 = vmatprep.subr.mxu0 0.0
        %1300 = vmatpush1.msra.mxu0 0.0
        %1301 = vmatprep.subr.mxu0 0.0
        %1302 = vmatpush1.msra.mxu0 0.0
        %1303 = vmatprep.subr.mxu0 0.0
        %1304 = vmatpush1.msra.mxu0 0.0
        %1305 = vmatprep.subr.mxu0 0.0
        %1306 = vmatpush1.msra.mxu0 0.0
        %1307 = vmatprep.subr.mxu0 0.0
        %1308 = vmatpush1.msra.mxu0 0.0
        %1309 = vmatprep.subr.mxu0 0.0
        %1310 = vmatpush1.msra.mxu0 0.0
        %1311 = vmatprep.subr.mxu0 0.0
        %1312 = vmatpush1.msra.mxu0 0.0
        %1313 = vmatprep.subr.mxu0 0.0
        %1314 = vmatpush1.msra.mxu0 0.0
        %1315 = vmatprep.subr.mxu0 0.0
        %1316 = vmatpush1.msra.mxu0 0.0
        %1317 = vmatprep.subr.mxu0 0.0
        %1318 = vmatpush1.msra.mxu0 0.0
        %1319 = vmatprep.subr.mxu0 0.0
        %1320 = vmatpush1.msra.mxu0 0.0
        %1321 = vmatprep.subr.mxu0 0.0
        %1322 = vmatpush1.msra.mxu0 0.0
        %1323 = vmatprep.subr.mxu0 0.0
        %1324 = vmatpush1.msra.mxu0 0.0
        %1325 = vmatprep.subr.mxu0 0.0
        %1326 = vmatpush1.msra.mxu0 0.0
        %1327 = vmatprep.subr.mxu0 0.0
        %1328 = vmatpush1.msra.mxu0 0.0
        %1329 = vmatprep.subr.mxu0 0.0
        %1330 = vmatpush1.msra.mxu0 0.0
        %1331 = vmatprep.subr.mxu0 0.0
        %1332 = vmatpush1.msra.mxu0 0.0
        %1333 = vmatprep.subr.mxu0 0.0
        %1334 = vmatpush1.msra.mxu0 0.0
        %1335 = vmatprep.subr.mxu0 0.0
        %1336 = vmatpush1.msra.mxu0 0.0
        %1337 = vmatprep.subr.mxu0 0.0
        %1338 = vmatpush1.msra.mxu0 0.0
        %1339 = vmatprep.subr.mxu0 0.0
        %1340 = vmatpush1.msra.mxu0 0.0
        %1341 = vmatprep.subr.mxu0 0.0
        %1342 = vmatpush1.msra.mxu0 0.0
        %1343 = vmatprep.mubr.f32.mxu0 0.0
        %1344 = vmatmul.mubr.f32.gmra.mrb[0].mxu0 %v1277
        %v1345 = vpop.f32.mrb[0].mxu0
        %v1346 = vadd.f32 0.0, %v1345
        %v1347 = vpop.f32.mrb[0].mxu0
        %1348 = vdwg.mxu0
        %v1350 = vsel %vm1103, %v1185, 0
        %1352 = vmatprep.subr.mxu0 0.0
        %1353 = vmatpush1.msra.mxu0 %v1272
        %1354 = vmatprep.subr.mxu0 0.0
        %1355 = vmatpush1.msra.mxu0 %v1273
        %1356 = vmatprep.subr.mxu0 0.0
        %1357 = vmatpush1.msra.mxu0 0.0
        %1358 = vmatprep.subr.mxu0 0.0
        %1359 = vmatpush1.msra.mxu0 0.0
        %1360 = vmatprep.subr.mxu0 0.0
        %1361 = vmatpush1.msra.mxu0 0.0
        %1362 = vmatprep.subr.mxu0 0.0
        %1363 = vmatpush1.msra.mxu0 0.0
        %1364 = vmatprep.subr.mxu0 0.0
        %1365 = vmatpush1.msra.mxu0 0.0
        %1366 = vmatprep.subr.mxu0 0.0
        %1367 = vmatpush1.msra.mxu0 0.0
        %1368 = vmatprep.subr.mxu0 0.0
        %1369 = vmatpush1.msra.mxu0 0.0
        %1370 = vmatprep.subr.mxu0 0.0
        %1371 = vmatpush1.msra.mxu0 0.0
        %1372 = vmatprep.subr.mxu0 0.0
        %1373 = vmatpush1.msra.mxu0 0.0
        %1374 = vmatprep.subr.mxu0 0.0
        %1375 = vmatpush1.msra.mxu0 0.0
        %1376 = vmatprep.subr.mxu0 0.0
        %1377 = vmatpush1.msra.mxu0 0.0
        %1378 = vmatprep.subr.mxu0 0.0
        %1379 = vmatpush1.msra.mxu0 0.0
        %1380 = vmatprep.subr.mxu0 0.0
        %1381 = vmatpush1.msra.mxu0 0.0
        %1382 = vmatprep.subr.mxu0 0.0
        %1383 = vmatpush1.msra.mxu0 0.0
        %1384 = vmatprep.subr.mxu0 0.0
        %1385 = vmatpush1.msra.mxu0 0.0
        %1386 = vmatprep.subr.mxu0 0.0
        %1387 = vmatpush1.msra.mxu0 0.0
        %1388 = vmatprep.subr.mxu0 0.0
        %1389 = vmatpush1.msra.mxu0 0.0
        %1390 = vmatprep.subr.mxu0 0.0
        %1391 = vmatpush1.msra.mxu0 0.0
        %1392 = vmatprep.subr.mxu0 0.0
        %1393 = vmatpush1.msra.mxu0 0.0
        %1394 = vmatprep.subr.mxu0 0.0
        %1395 = vmatpush1.msra.mxu0 0.0
        %1396 = vmatprep.subr.mxu0 0.0
        %1397 = vmatpush1.msra.mxu0 0.0
        %1398 = vmatprep.subr.mxu0 0.0
        %1399 = vmatpush1.msra.mxu0 0.0
        %1400 = vmatprep.subr.mxu0 0.0
        %1401 = vmatpush1.msra.mxu0 0.0
        %1402 = vmatprep.subr.mxu0 0.0
        %1403 = vmatpush1.msra.mxu0 0.0
        %1404 = vmatprep.subr.mxu0 0.0
        %1405 = vmatpush1.msra.mxu0 0.0
        %1406 = vmatprep.subr.mxu0 0.0
        %1407 = vmatpush1.msra.mxu0 0.0
        %1408 = vmatprep.subr.mxu0 0.0
        %1409 = vmatpush1.msra.mxu0 0.0
        %1410 = vmatprep.subr.mxu0 0.0
        %1411 = vmatpush1.msra.mxu0 0.0
        %1412 = vmatprep.subr.mxu0 0.0
        %1413 = vmatpush1.msra.mxu0 0.0
        %1414 = vmatprep.subr.mxu0 0.0
        %1415 = vmatpush1.msra.mxu0 0.0
        %1416 = vmatprep.mubr.f32.mxu0 0.0
        %1417 = vmatmul.mubr.f32.gmra.mrb[0].mxu0 %v1350
        %v1418 = vpop.f32.mrb[0].mxu0
        %v1419 = vadd.f32 %v1346, %v1418
        %v1420 = vpop.f32.mrb[0].mxu0
        %1421 = vdwg.mxu0
        %v1422 = vld [vmem:[%s3 + $0x68] sm:$0x1]
        %v1423 = vlaneseq
        %v1424 = vshrl.u32 %v1423, 7
        %v1425 = vsub.s32 0, %v1424
        %v1426 = vrot.slane %v1422, %v1425
        %v1427 = vadd.f32 %v1419, %v1426
        %v1428 = vmax.f32 %v1427, 0.0
        %v1429 = vld [vmem:[%s3 + $0x70] sm:$0xff]
        %v1430 = vld [vmem:[%s3 + $0x78] sm:$0xff]
        %v1431 = vld [vmem:[%s3 + $0x80] sm:$0xff]
        %v1432 = vld [vmem:[%s3 + $0x88] sm:$0xff]
        %v1433 = vld [vmem:[%s3 + $0x90] sm:$0x1]
        %v1434 = vlaneseq
        %v1435 = vshrl.u32 %v1434, 7
        %v1436 = vsub.s32 0, %v1435
        %v1437 = vrot.slane %v1433, %v1436
        %vm1438 = vcmask 261120
        %v1440 = vsel %vm1438, %v1428, 0
        %1442 = vmatprep.subr.mxu0 0.0
        %1443 = vmatpush1.msra.mxu0 %v1429
        %1444 = vmatprep.subr.mxu0 0.0
        %1445 = vmatpush1.msra.mxu0 %v1430
        %1446 = vmatprep.subr.mxu0 0.0
        %1447 = vmatpush1.msra.mxu0 %v1431
        %1448 = vmatprep.subr.mxu0 0.0
        %1449 = vmatpush1.msra.mxu0 %v1432
        %1450 = vmatprep.subr.mxu0 0.0
        %1451 = vmatpush1.msra.mxu0 0.0
        %1452 = vmatprep.subr.mxu0 0.0
        %1453 = vmatpush1.msra.mxu0 0.0
        %1454 = vmatprep.subr.mxu0 0.0
        %1455 = vmatpush1.msra.mxu0 0.0
        %1456 = vmatprep.subr.mxu0 0.0
        %1457 = vmatpush1.msra.mxu0 0.0
        %1458 = vmatprep.subr.mxu0 0.0
        %1459 = vmatpush1.msra.mxu0 0.0
        %1460 = vmatprep.subr.mxu0 0.0
        %1461 = vmatpush1.msra.mxu0 0.0
        %1462 = vmatprep.subr.mxu0 0.0
        %1463 = vmatpush1.msra.mxu0 0.0
        %1464 = vmatprep.subr.mxu0 0.0
        %1465 = vmatpush1.msra.mxu0 0.0
        %1466 = vmatprep.subr.mxu0 0.0
        %1467 = vmatpush1.msra.mxu0 0.0
        %1468 = vmatprep.subr.mxu0 0.0
        %1469 = vmatpush1.msra.mxu0 0.0
        %1470 = vmatprep.subr.mxu0 0.0
        %1471 = vmatpush1.msra.mxu0 0.0
        %1472 = vmatprep.subr.mxu0 0.0
        %1473 = vmatpush1.msra.mxu0 0.0
        %1474 = vmatprep.subr.mxu0 0.0
        %1475 = vmatpush1.msra.mxu0 0.0
        %1476 = vmatprep.subr.mxu0 0.0
        %1477 = vmatpush1.msra.mxu0 0.0
        %1478 = vmatprep.subr.mxu0 0.0
        %1479 = vmatpush1.msra.mxu0 0.0
        %1480 = vmatprep.subr.mxu0 0.0
        %1481 = vmatpush1.msra.mxu0 0.0
        %1482 = vmatprep.subr.mxu0 0.0
        %1483 = vmatpush1.msra.mxu0 0.0
        %1484 = vmatprep.subr.mxu0 0.0
        %1485 = vmatpush1.msra.mxu0 0.0
        %1486 = vmatprep.subr.mxu0 0.0
        %1487 = vmatpush1.msra.mxu0 0.0
        %1488 = vmatprep.subr.mxu0 0.0
        %1489 = vmatpush1.msra.mxu0 0.0
        %1490 = vmatprep.subr.mxu0 0.0
        %1491 = vmatpush1.msra.mxu0 0.0
        %1492 = vmatprep.subr.mxu0 0.0
        %1493 = vmatpush1.msra.mxu0 0.0
        %1494 = vmatprep.subr.mxu0 0.0
        %1495 = vmatpush1.msra.mxu0 0.0
        %1496 = vmatprep.subr.mxu0 0.0
        %1497 = vmatpush1.msra.mxu0 0.0
        %1498 = vmatprep.subr.mxu0 0.0
        %1499 = vmatpush1.msra.mxu0 0.0
        %1500 = vmatprep.subr.mxu0 0.0
        %1501 = vmatpush1.msra.mxu0 0.0
        %1502 = vmatprep.subr.mxu0 0.0
        %1503 = vmatpush1.msra.mxu0 0.0
        %1504 = vmatprep.subr.mxu0 0.0
        %1505 = vmatpush1.msra.mxu0 0.0
        %1506 = vmatprep.mubr.f32.mxu0 0.0
        %1507 = vmatmul.mubr.f32.gmra.mrb[0].mxu0 %v1440
        %v1508 = vpop.f32.mrb[0].mxu0
        %v1509 = vadd.f32 %v1437, %v1508
        %v1510 = vpop.f32.mrb[0].mxu0
        %1511 = vdwg.mxu0
        %v1512 = vld [vmem:[%s258] sm:$0xff]
        %v1513 = vld [vmem:[%s3 + $0x98] sm:$0x1]
        %v1514 = vlaneseq
        %v1515 = vshrl.u32 %v1514, 7
        %v1516 = vsub.s32 0, %v1515
        %v1517 = vrot.slane %v1513, %v1516
        %v1518 = vmul.f32 %v1512, %v1517
        %v1519 = vsel %vm1193, %v1518, 0.0
        %1520 = vadd.xlane.f32.xlu0 %v1519
        %v1521 = vpop.xlane.xlu0 %1520
        %v1522 = vadd.f32 %v1509, %v1521
        %1523 = vst [vmem:[%s244] sm:$0xff] %v1522
        %s1524 = sand.u32 %s147, 1
        %s1525 = scalar_lea.sflag [#allocation6], %s1524
        %s1526 = sand.u32 %s147, 1
        %s1527 = smul.addr %s1526, 8
        %s1528 = scalar_lea.vmem [#allocation5], %s1527
        // Predicated region
        $region41: #{tpu_custom_call.1} parent=39 // pred_check
          %p1529 = pneg %p157
        $region42: #{tpu_custom_call.1} parent=39 // pred_check_branch
          %1531 = sbr.rel (%p1529) target = $region44
        $region43: #{tpu_custom_call.1} parent=39 // pred_region
          %s1533 = ssub.s32 128, 128
          %1534 = vsyncadd %s1525, %s1533
          %s1535 = smul.addr %s19, 128
          %s1536 = scalar_lea.hbm %s5, %s1535
          %s1538 = sshll.u32 %s1528, 4
          %s1539 = int_to_ptr.vmem [resolvable:$true] %s1538
          %1541 = dma.vmem_to_hbm [thread:$0]  %s1539, 128, %s1536, %s1525
        $region44: #{tpu_custom_call.1} parent=39 // pred_fallthru
          _
      $region40: #{tpu_custom_call.1} parent=5 // pred_fallthru
        _
      %p1542 = scmp.le.s32.totalorder 2, %s14
      // Predicated region
      $region45: #{tpu_custom_call.1} parent=5 // pred_check
        %p1543 = pneg %p1542
      $region46: #{tpu_custom_call.1} parent=5 // pred_check_branch
        %1545 = sbr.rel (%p1543) target = $region48
      $region47: #{tpu_custom_call.1} parent=5 // pred_region
        %s1546 = ssub.s32 %s14, 2
        // Predicated region
        $region49: #{tpu_custom_call.1} parent=47 // pred_check
          %p1547 = pneg %p163
        $region50: #{tpu_custom_call.1} parent=47 // pred_check_branch
          %1549 = sbr.rel (%p1547) target = $region52
        $region51: #{tpu_custom_call.1} parent=47 // pred_region
          %s1550 = sand.u32 %s148, 1
          %s1551 = scalar_lea.sflag [#allocation6], %s1550
          %s1552 = sand.u32 %s148, 1
          %s1553 = smul.addr %s1552, 8
          %s1554 = scalar_lea.vmem [#allocation5], %s1553
          %1555 = dma.done %s1551, 128
        $region52: #{tpu_custom_call.1} parent=47 // pred_fallthru
          _
      $region48: #{tpu_custom_call.1} parent=5 // pred_fallthru
        _
    $region6: #{tpu_custom_call.1} parent=1 // loop_footer
      %s18 = sadd.s32 1, %s14
    $region7: #{tpu_custom_call.1} parent=1 // loop_footer_branch
      %13 = sbr.rel target = $region3
    $region8: #{tpu_custom_call.1} parent=1 // loop_exit
      _
    %1556 = vsyncpa [#allocation6], 1
    %s1557 = scalar_lea.sflag [#allocation6], 1
    %1558 = vsyncpa %s1557, 1

</llo_original>
